<compile_context>
chip_gen: v6e
topology: v6e:2x2x1
jax: 0.10.0
libtpu: 0.0.40
codegen_flags: <defaults>
</compile_context>

<pallas_src>
import jax
import jax.numpy as jnp
from jax import lax
from jax.experimental import pallas as pl
from jax.experimental.pallas import tpu as pltpu


def _lstm_ae_kernel(x_ref,                             # [T, Bt, D]
                    wih_e_ref, whh_e_ref, be_ref,      # [D,4H], [H,4H], [1,4H]
                    watt_ref, batt_ref,                # [H,H],  [1,H]
                    wih_d_ref, whh_d_ref, bd_ref,      # [H,4H], [H,4H], [1,4H]
                    wout_ref, bout_ref,                # [H,D],  [1,D]
                    out_ref):                          # [T, Bt, D]
    T, Bt, D = x_ref.shape
    H = whh_e_ref.shape[0]
    f32 = jnp.float32
    mm = whh_e_ref.dtype          # matmul-operand dtype (f32 or bf16)

    # Fused recurrent weights, loaded once ([H, 4H] lane-dense tiles).
    whh_e = whh_e_ref[...]
    whh_d = whh_d_ref[...]

    # ---- encoder input projection: ONE (T*Bt, D)@(D, 4H) matmul, bias folded.
    # Leading-dim merge of the block is layout-preserving (Bt % 8 == 0).
    x_flat = x_ref[...].reshape(T * Bt, D).astype(mm)
    xg = jnp.dot(x_flat, wih_e_ref[...],
                 preferred_element_type=f32) + be_ref[...]      # [T*Bt, 4H]

    def cell(pre, c):
        # pre: [Bt, 4H] packed (i|f|g|o) pre-activations (PyTorch gate order).
        # One sigmoid over the packed vreg, tanh only on the g lane-slice.
        sig = jax.nn.sigmoid(pre)
        i = sig[:, 0 * H:1 * H]
        f = sig[:, 1 * H:2 * H]
        o = sig[:, 3 * H:4 * H]
        g = jnp.tanh(pre[:, 2 * H:3 * H])
        c_new = f * c + i * g
        h_new = o * jnp.tanh(c_new)
        return h_new, c_new

    # ---- encoder recurrence (fully unrolled; single fused matmul per step) ----
    # TODO(synk): hold the loop-invariant whh RHS resident in the MXU across the
    # unrolled loop via pltpu.matmul_push_rhs/acc_lhs/pop to avoid re-pushing it
    # every step; kept on jnp.dot for portability here.
    h = jnp.zeros((Bt, H), f32)
    c = jnp.zeros((Bt, H), f32)
    for t in range(T):
        pre = xg[t * Bt:(t + 1) * Bt, :] + jnp.dot(
            h.astype(mm), whh_e, preferred_element_type=f32)
        h, c = cell(pre, c)

    # ---- feature attention on the final encoder hidden state ----
    att = jax.nn.sigmoid(
        jnp.dot(h.astype(mm), watt_ref[...],
                preferred_element_type=f32) + batt_ref[...])
    z_att = h * att                                             # [Bt, H] f32

    # ---- decoder input projection: loop-invariant, fused gates + bias, once ----
    zg = jnp.dot(z_att.astype(mm), wih_d_ref[...],
                 preferred_element_type=f32) + bd_ref[...]      # [Bt, 4H]

    # ---- decoder recurrence; per-step h kept live in vregs (no VMEM scratch) ----
    h = jnp.zeros((Bt, H), f32)
    c = jnp.zeros((Bt, H), f32)
    hs = []
    for t in range(T):
        pre = zg + jnp.dot(h.astype(mm), whh_d, preferred_element_type=f32)
        h, c = cell(pre, c)
        hs.append(h)

    # ---- output projection batched over all T*Bt rows + one contiguous store ----
    ys = jnp.concatenate(hs, axis=0).astype(mm)                 # [T*Bt, H]
    y = jnp.dot(ys, wout_ref[...], preferred_element_type=f32) + bout_ref[...]
    out_ref[...] = y.reshape(T, Bt, D).astype(out_ref.dtype)


def lstm_autoencoder_forward(x, params, *, matmul_dtype=jnp.float32,
                             batch_tile=256):
    """x: [B, T, D] float32 -> recon [B, T, D].

    matmul_dtype: dtype of MXU operands (weights / h / x). Element-wise gate
    math and accumulation stay float32. Use jnp.bfloat16 on v6e/v7x for ~3x
    faster per-step MXU latency (looser numerics).
    """
    B, T, D = x.shape
    H = params["att_w"].shape[0]
    mm = matmul_dtype

    # Pad batch to a multiple of 8 sublanes, pick a batch tile, pad to the tile.
    B8 = max(8, ((B + 7) // 8) * 8)
    Bt = max(8, (min(batch_tile, B8) // 8) * 8)
    Bp = ((B8 + Bt - 1) // Bt) * Bt
    grid = (Bp // Bt,)

    x_tm = jnp.transpose(x, (1, 0, 2))                 # time-major [T, B, D]
    if Bp != B:
        x_tm = jnp.pad(x_tm, ((0, 0), (0, Bp - B), (0, 0)))

    def fuse_gates(w):
        # torch layout [4H, in] (i,f,g,o stacked on rows) -> fused [in, 4H]
        # (columns 0:H = gate i, H:2H = f, 2H:3H = g, 3H:4H = o).
        return jnp.transpose(w, (1, 0)).astype(mm)

    def fuse_bias(bih, bhh):
        return (bih + bhh).reshape(1, -1).astype(jnp.float32)

    kernel_inputs = (
        x_tm,                                                   # [T, Bp, D]
        fuse_gates(params["enc_wih"]),                          # [D, 4H]
        fuse_gates(params["enc_whh"]),                          # [H, 4H]
        fuse_bias(params["enc_bih"], params["enc_bhh"]),        # [1, 4H]
        params["att_w"].T.astype(mm),                           # [H, H]
        params["att_b"].reshape(1, H).astype(jnp.float32),      # [1, H]
        fuse_gates(params["dec_wih"]),                          # [H, 4H]
        fuse_gates(params["dec_whh"]),                          # [H, 4H]
        fuse_bias(params["dec_bih"], params["dec_bhh"]),        # [1, 4H]
        params["out_w"].T.astype(mm),                           # [H, D]
        params["out_b"].reshape(1, D).astype(jnp.float32),      # [1, D]
    )

    def wspec(arr):
        # Weights/biases are small: whole array resident each grid step.
        return pl.BlockSpec(arr.shape, lambda i: (0, 0))

    in_specs = ([pl.BlockSpec((T, Bt, D), lambda i: (0, i, 0))] +
                [wspec(a) for a in kernel_inputs[1:]])
    out_spec = pl.BlockSpec((T, Bt, D), lambda i: (0, i, 0))

    recon_tm = pl.pallas_call(
        _lstm_ae_kernel,
        out_shape=jax.ShapeDtypeStruct((T, Bp, D), x.dtype),
        grid=grid,
        in_specs=in_specs,
        out_specs=out_spec,
        compiler_params=pltpu.CompilerParams(
            dimension_semantics=("parallel",),
            vmem_limit_bytes=32 * 1024 * 1024),
    )(*kernel_inputs)

    recon = jnp.transpose(recon_tm, (1, 0, 2))        # [Bp, T, D]
    return recon[:B]


def _reference_forward(x, params):
    """Pure-JAX reference mirroring torch.nn.LSTM semantics (for validation)."""
    B, T, D = x.shape
    H = params["enc_whh"].shape[1]

    def run_lstm(xs, wih, whh, bih, bhh):
        def step(carry, x_t):
            h, c = carry
            gates = x_t @ wih.T + bih + h @ whh.T + bhh
            i, f, g, o = jnp.split(gates, 4, axis=-1)
            c = jax.nn.sigmoid(f) * c + jax.nn.sigmoid(i) * jnp.tanh(g)
            h = jax.nn.sigmoid(o) * jnp.tanh(c)
            return (h, c), h

        h0 = jnp.zeros((B, H), x.dtype)
        (h_n, _), hs = lax.scan(step, (h0, h0), jnp.transpose(xs, (1, 0, 2)))
        return jnp.transpose(hs, (1, 0, 2)), h_n

    _, h_n = run_lstm(x, params["enc_wih"], params["enc_whh"],
                      params["enc_bih"], params["enc_bhh"])
    z_att = h_n * jax.nn.sigmoid(h_n @ params["att_w"].T + params["att_b"])
    dec_in = jnp.repeat(z_att[:, None, :], T, axis=1)
    dec_out, _ = run_lstm(dec_in, params["dec_wih"], params["dec_whh"],
                          params["dec_bih"], params["dec_bhh"])
    return dec_out @ params["out_w"].T + params["out_b"]


def init_params(key, input_dim, hidden_dim):
    """Deterministic parameter init (PyTorch-like uniform(-1/sqrt(H), 1/sqrt(H)))."""
    D, H = input_dim, hidden_dim
    ks = jax.random.split(key, 12)
    s = 1.0 / jnp.sqrt(jnp.float32(H))

    def u(k, shape):
        return jax.random.uniform(k, shape, jnp.float32, -s, s)

    return dict(
        enc_wih=u(ks[0], (4 * H, D)), enc_whh=u(ks[1], (4 * H, H)),
        enc_bih=u(ks[2], (4 * H,)),   enc_bhh=u(ks[3], (4 * H,)),
        att_w=u(ks[4], (H, H)),       att_b=u(ks[5], (H,)),
        dec_wih=u(ks[6], (4 * H, H)), dec_whh=u(ks[7], (4 * H, H)),
        dec_bih=u(ks[8], (4 * H,)),   dec_bhh=u(ks[9], (4 * H,)),
        out_w=u(ks[10], (D, H)),      out_b=u(ks[11], (D,)),
    )


if __name__ == "__main__":
    B, T, D, H = 2, 8, 8, 32

    key = jax.random.PRNGKey(0)
    k_x, k_p = jax.random.split(key)
    x = jax.random.normal(k_x, (B, T, D), jnp.float32)
    params = init_params(k_p, D, H)

    ref = jax.block_until_ready(_reference_forward(x, params))

    # f32 MXU operands: strict check against the reference.
    recon = jax.block_until_ready(lstm_autoencoder_forward(x, params))
    assert recon.shape == (B, T, D), recon.shape
    assert jnp.allclose(recon, ref, atol=1e-5, rtol=1e-5), (
        float(jnp.max(jnp.abs(recon - ref))))

    # bf16 MXU operands (f32 accumulation / element-wise math): the recurrence
    # amplifies bf16 rounding, so validate at a deliberately loose tolerance.
    recon_bf16 = jax.block_until_ready(
        lstm_autoencoder_forward(x, params, matmul_dtype=jnp.bfloat16))
    assert recon_bf16.shape == (B, T, D), recon_bf16.shape
    assert jnp.allclose(recon_bf16, ref, atol=1e-1, rtol=1e-1), (
        float(jnp.max(jnp.abs(recon_bf16 - ref))))

    print("KERNEL_OK")
</pallas_src>

<mosaic_0001>
module attributes {stable_mosaic.version = 11 : i64} {
  func.func @_lstm_ae_kernel(%arg0: i32, %arg1: memref<8x8x8xf32, #tpu.memory_space<vmem>>, %arg2: memref<8x128xf32, #tpu.memory_space<vmem>>, %arg3: memref<32x128xf32, #tpu.memory_space<vmem>>, %arg4: memref<1x128xf32, #tpu.memory_space<vmem>>, %arg5: memref<32x32xf32, #tpu.memory_space<vmem>>, %arg6: memref<1x32xf32, #tpu.memory_space<vmem>>, %arg7: memref<32x128xf32, #tpu.memory_space<vmem>>, %arg8: memref<32x128xf32, #tpu.memory_space<vmem>>, %arg9: memref<1x128xf32, #tpu.memory_space<vmem>>, %arg10: memref<32x8xf32, #tpu.memory_space<vmem>>, %arg11: memref<1x8xf32, #tpu.memory_space<vmem>>, %arg12: memref<8x8x8xf32, #tpu.memory_space<vmem>>) attributes {dimension_semantics = [#tpu.dimension_semantics<parallel>], iteration_bounds = array<i64: 1>, scalar_prefetch = 0 : i64, scratch_operands = 0 : i64, tpu.core_type = #tpu.core_type<tc>, window_params = [{transform_indices = @transform_0, window_bounds = array<i64: 8, 8, 8>}, {pipeline_mode = #tpu.pipeline_mode<synchronous>, transform_indices = @transform_1, window_bounds = array<i64: 8, 128>}, {pipeline_mode = #tpu.pipeline_mode<synchronous>, transform_indices = @transform_2, window_bounds = array<i64: 32, 128>}, {pipeline_mode = #tpu.pipeline_mode<synchronous>, transform_indices = @transform_3, window_bounds = array<i64: 1, 128>}, {pipeline_mode = #tpu.pipeline_mode<synchronous>, transform_indices = @transform_4, window_bounds = array<i64: 32, 32>}, {pipeline_mode = #tpu.pipeline_mode<synchronous>, transform_indices = @transform_5, window_bounds = array<i64: 1, 32>}, {pipeline_mode = #tpu.pipeline_mode<synchronous>, transform_indices = @transform_6, window_bounds = array<i64: 32, 128>}, {pipeline_mode = #tpu.pipeline_mode<synchronous>, transform_indices = @transform_7, window_bounds = array<i64: 32, 128>}, {pipeline_mode = #tpu.pipeline_mode<synchronous>, transform_indices = @transform_8, window_bounds = array<i64: 1, 128>}, {pipeline_mode = #tpu.pipeline_mode<synchronous>, transform_indices = @transform_9, window_bounds = array<i64: 32, 8>}, {pipeline_mode = #tpu.pipeline_mode<synchronous>, transform_indices = @transform_10, window_bounds = array<i64: 1, 8>}, {transform_indices = @transform_11, window_bounds = array<i64: 8, 8, 8>}]} {
    %c0 = arith.constant 0 : index
    %c0_0 = arith.constant 0 : index
    %0 = vector.load %arg3[%c0, %c0_0] : memref<32x128xf32, #tpu.memory_space<vmem>>, vector<32x128xf32>
    %c0_1 = arith.constant 0 : index
    %c0_2 = arith.constant 0 : index
    %1 = vector.load %arg8[%c0_1, %c0_2] : memref<32x128xf32, #tpu.memory_space<vmem>>, vector<32x128xf32>
    %c0_3 = arith.constant 0 : index
    %c0_4 = arith.constant 0 : index
    %c0_5 = arith.constant 0 : index
    %2 = vector.load %arg1[%c0_3, %c0_4, %c0_5] : memref<8x8x8xf32, #tpu.memory_space<vmem>>, vector<8x8x8xf32>
    %3 = vector.shape_cast %2 : vector<8x8x8xf32> to vector<64x8xf32>
    %c0_6 = arith.constant 0 : index
    %c0_7 = arith.constant 0 : index
    %4 = vector.load %arg2[%c0_6, %c0_7] : memref<8x128xf32, #tpu.memory_space<vmem>>, vector<8x128xf32>
    %cst = arith.constant dense<0.000000e+00> : vector<64x128xf32>
    %5 = tpu.matmul %3, %4, %cst {dimension_numbers = #tpu.dot_dimension_numbers<[1], [0], [0], [1], [0, 0, 1, 1], [], []>} : vector<64x8xf32>, vector<8x128xf32>, vector<64x128xf32> -> vector<64x128xf32>
    %c0_8 = arith.constant 0 : index
    %c0_9 = arith.constant 0 : index
    %6 = vector.load %arg4[%c0_8, %c0_9] : memref<1x128xf32, #tpu.memory_space<vmem>>, vector<1x128xf32>
    %7 = vector.broadcast %6 : vector<1x128xf32> to vector<64x128xf32>
    %8 = arith.addf %5, %7 : vector<64x128xf32>
    %cst_10 = arith.constant 0.000000e+00 : f32
    %9 = vector.broadcast %cst_10 : f32 to vector<8x32xf32>
    %cst_11 = arith.constant 0.000000e+00 : f32
    %10 = vector.broadcast %cst_11 : f32 to vector<8x32xf32>
    %11 = vector.extract_strided_slice %8 {offsets = [0, 0], sizes = [8, 128], strides = [1, 1]} : vector<64x128xf32> to vector<8x128xf32>
    %cst_12 = arith.constant dense<0.000000e+00> : vector<8x128xf32>
    %12 = tpu.matmul %9, %0, %cst_12 {dimension_numbers = #tpu.dot_dimension_numbers<[1], [0], [0], [1], [0, 0, 1, 1], [], []>} : vector<8x32xf32>, vector<32x128xf32>, vector<8x128xf32> -> vector<8x128xf32>
    %13 = arith.addf %11, %12 : vector<8x128xf32>
    %14 = arith.negf %13 : vector<8x128xf32>
    %15 = math.exp %14 : vector<8x128xf32>
    %cst_13 = arith.constant 1.000000e+00 : f32
    %16 = vector.broadcast %cst_13 : f32 to vector<8x128xf32>
    %17 = arith.addf %16, %15 : vector<8x128xf32>
    %18 = arith.divf %16, %17 : vector<8x128xf32>
    %19 = vector.extract_strided_slice %18 {offsets = [0, 0], sizes = [8, 32], strides = [1, 1]} : vector<8x128xf32> to vector<8x32xf32>
    %20 = vector.extract_strided_slice %18 {offsets = [0, 32], sizes = [8, 32], strides = [1, 1]} : vector<8x128xf32> to vector<8x32xf32>
    %21 = vector.extract_strided_slice %18 {offsets = [0, 96], sizes = [8, 32], strides = [1, 1]} : vector<8x128xf32> to vector<8x32xf32>
    %22 = vector.extract_strided_slice %13 {offsets = [0, 64], sizes = [8, 32], strides = [1, 1]} : vector<8x128xf32> to vector<8x32xf32>
    %23 = math.tanh %22 : vector<8x32xf32>
    %24 = arith.mulf %20, %10 : vector<8x32xf32>
    %25 = arith.mulf %19, %23 : vector<8x32xf32>
    %26 = arith.addf %24, %25 : vector<8x32xf32>
    %27 = math.tanh %26 : vector<8x32xf32>
    %28 = arith.mulf %21, %27 : vector<8x32xf32>
    %29 = vector.extract_strided_slice %8 {offsets = [8, 0], sizes = [8, 128], strides = [1, 1]} : vector<64x128xf32> to vector<8x128xf32>
    %cst_14 = arith.constant dense<0.000000e+00> : vector<8x128xf32>
    %30 = tpu.matmul %28, %0, %cst_14 {dimension_numbers = #tpu.dot_dimension_numbers<[1], [0], [0], [1], [0, 0, 1, 1], [], []>} : vector<8x32xf32>, vector<32x128xf32>, vector<8x128xf32> -> vector<8x128xf32>
    %31 = arith.addf %29, %30 : vector<8x128xf32>
    %32 = arith.negf %31 : vector<8x128xf32>
    %33 = math.exp %32 : vector<8x128xf32>
    %cst_15 = arith.constant 1.000000e+00 : f32
    %34 = vector.broadcast %cst_15 : f32 to vector<8x128xf32>
    %35 = arith.addf %34, %33 : vector<8x128xf32>
    %36 = arith.divf %34, %35 : vector<8x128xf32>
    %37 = vector.extract_strided_slice %36 {offsets = [0, 0], sizes = [8, 32], strides = [1, 1]} : vector<8x128xf32> to vector<8x32xf32>
    %38 = vector.extract_strided_slice %36 {offsets = [0, 32], sizes = [8, 32], strides = [1, 1]} : vector<8x128xf32> to vector<8x32xf32>
    %39 = vector.extract_strided_slice %36 {offsets = [0, 96], sizes = [8, 32], strides = [1, 1]} : vector<8x128xf32> to vector<8x32xf32>
    %40 = vector.extract_strided_slice %31 {offsets = [0, 64], sizes = [8, 32], strides = [1, 1]} : vector<8x128xf32> to vector<8x32xf32>
    %41 = math.tanh %40 : vector<8x32xf32>
    %42 = arith.mulf %38, %26 : vector<8x32xf32>
    %43 = arith.mulf %37, %41 : vector<8x32xf32>
    %44 = arith.addf %42, %43 : vector<8x32xf32>
    %45 = math.tanh %44 : vector<8x32xf32>
    %46 = arith.mulf %39, %45 : vector<8x32xf32>
    %47 = vector.extract_strided_slice %8 {offsets = [16, 0], sizes = [8, 128], strides = [1, 1]} : vector<64x128xf32> to vector<8x128xf32>
    %cst_16 = arith.constant dense<0.000000e+00> : vector<8x128xf32>
    %48 = tpu.matmul %46, %0, %cst_16 {dimension_numbers = #tpu.dot_dimension_numbers<[1], [0], [0], [1], [0, 0, 1, 1], [], []>} : vector<8x32xf32>, vector<32x128xf32>, vector<8x128xf32> -> vector<8x128xf32>
    %49 = arith.addf %47, %48 : vector<8x128xf32>
    %50 = arith.negf %49 : vector<8x128xf32>
    %51 = math.exp %50 : vector<8x128xf32>
    %cst_17 = arith.constant 1.000000e+00 : f32
    %52 = vector.broadcast %cst_17 : f32 to vector<8x128xf32>
    %53 = arith.addf %52, %51 : vector<8x128xf32>
    %54 = arith.divf %52, %53 : vector<8x128xf32>
    %55 = vector.extract_strided_slice %54 {offsets = [0, 0], sizes = [8, 32], strides = [1, 1]} : vector<8x128xf32> to vector<8x32xf32>
    %56 = vector.extract_strided_slice %54 {offsets = [0, 32], sizes = [8, 32], strides = [1, 1]} : vector<8x128xf32> to vector<8x32xf32>
    %57 = vector.extract_strided_slice %54 {offsets = [0, 96], sizes = [8, 32], strides = [1, 1]} : vector<8x128xf32> to vector<8x32xf32>
    %58 = vector.extract_strided_slice %49 {offsets = [0, 64], sizes = [8, 32], strides = [1, 1]} : vector<8x128xf32> to vector<8x32xf32>
    %59 = math.tanh %58 : vector<8x32xf32>
    %60 = arith.mulf %56, %44 : vector<8x32xf32>
    %61 = arith.mulf %55, %59 : vector<8x32xf32>
    %62 = arith.addf %60, %61 : vector<8x32xf32>
    %63 = math.tanh %62 : vector<8x32xf32>
    %64 = arith.mulf %57, %63 : vector<8x32xf32>
    %65 = vector.extract_strided_slice %8 {offsets = [24, 0], sizes = [8, 128], strides = [1, 1]} : vector<64x128xf32> to vector<8x128xf32>
    %cst_18 = arith.constant dense<0.000000e+00> : vector<8x128xf32>
    %66 = tpu.matmul %64, %0, %cst_18 {dimension_numbers = #tpu.dot_dimension_numbers<[1], [0], [0], [1], [0, 0, 1, 1], [], []>} : vector<8x32xf32>, vector<32x128xf32>, vector<8x128xf32> -> vector<8x128xf32>
    %67 = arith.addf %65, %66 : vector<8x128xf32>
    %68 = arith.negf %67 : vector<8x128xf32>
    %69 = math.exp %68 : vector<8x128xf32>
    %cst_19 = arith.constant 1.000000e+00 : f32
    %70 = vector.broadcast %cst_19 : f32 to vector<8x128xf32>
    %71 = arith.addf %70, %69 : vector<8x128xf32>
    %72 = arith.divf %70, %71 : vector<8x128xf32>
    %73 = vector.extract_strided_slice %72 {offsets = [0, 0], sizes = [8, 32], strides = [1, 1]} : vector<8x128xf32> to vector<8x32xf32>
    %74 = vector.extract_strided_slice %72 {offsets = [0, 32], sizes = [8, 32], strides = [1, 1]} : vector<8x128xf32> to vector<8x32xf32>
    %75 = vector.extract_strided_slice %72 {offsets = [0, 96], sizes = [8, 32], strides = [1, 1]} : vector<8x128xf32> to vector<8x32xf32>
    %76 = vector.extract_strided_slice %67 {offsets = [0, 64], sizes = [8, 32], strides = [1, 1]} : vector<8x128xf32> to vector<8x32xf32>
    %77 = math.tanh %76 : vector<8x32xf32>
    %78 = arith.mulf %74, %62 : vector<8x32xf32>
    %79 = arith.mulf %73, %77 : vector<8x32xf32>
    %80 = arith.addf %78, %79 : vector<8x32xf32>
    %81 = math.tanh %80 : vector<8x32xf32>
    %82 = arith.mulf %75, %81 : vector<8x32xf32>
    %83 = vector.extract_strided_slice %8 {offsets = [32, 0], sizes = [8, 128], strides = [1, 1]} : vector<64x128xf32> to vector<8x128xf32>
    %cst_20 = arith.constant dense<0.000000e+00> : vector<8x128xf32>
    %84 = tpu.matmul %82, %0, %cst_20 {dimension_numbers = #tpu.dot_dimension_numbers<[1], [0], [0], [1], [0, 0, 1, 1], [], []>} : vector<8x32xf32>, vector<32x128xf32>, vector<8x128xf32> -> vector<8x128xf32>
    %85 = arith.addf %83, %84 : vector<8x128xf32>
    %86 = arith.negf %85 : vector<8x128xf32>
    %87 = math.exp %86 : vector<8x128xf32>
    %cst_21 = arith.constant 1.000000e+00 : f32
    %88 = vector.broadcast %cst_21 : f32 to vector<8x128xf32>
    %89 = arith.addf %88, %87 : vector<8x128xf32>
    %90 = arith.divf %88, %89 : vector<8x128xf32>
    %91 = vector.extract_strided_slice %90 {offsets = [0, 0], sizes = [8, 32], strides = [1, 1]} : vector<8x128xf32> to vector<8x32xf32>
    %92 = vector.extract_strided_slice %90 {offsets = [0, 32], sizes = [8, 32], strides = [1, 1]} : vector<8x128xf32> to vector<8x32xf32>
    %93 = vector.extract_strided_slice %90 {offsets = [0, 96], sizes = [8, 32], strides = [1, 1]} : vector<8x128xf32> to vector<8x32xf32>
    %94 = vector.extract_strided_slice %85 {offsets = [0, 64], sizes = [8, 32], strides = [1, 1]} : vector<8x128xf32> to vector<8x32xf32>
    %95 = math.tanh %94 : vector<8x32xf32>
    %96 = arith.mulf %92, %80 : vector<8x32xf32>
    %97 = arith.mulf %91, %95 : vector<8x32xf32>
    %98 = arith.addf %96, %97 : vector<8x32xf32>
    %99 = math.tanh %98 : vector<8x32xf32>
    %100 = arith.mulf %93, %99 : vector<8x32xf32>
    %101 = vector.extract_strided_slice %8 {offsets = [40, 0], sizes = [8, 128], strides = [1, 1]} : vector<64x128xf32> to vector<8x128xf32>
    %cst_22 = arith.constant dense<0.000000e+00> : vector<8x128xf32>
    %102 = tpu.matmul %100, %0, %cst_22 {dimension_numbers = #tpu.dot_dimension_numbers<[1], [0], [0], [1], [0, 0, 1, 1], [], []>} : vector<8x32xf32>, vector<32x128xf32>, vector<8x128xf32> -> vector<8x128xf32>
    %103 = arith.addf %101, %102 : vector<8x128xf32>
    %104 = arith.negf %103 : vector<8x128xf32>
    %105 = math.exp %104 : vector<8x128xf32>
    %cst_23 = arith.constant 1.000000e+00 : f32
    %106 = vector.broadcast %cst_23 : f32 to vector<8x128xf32>
    %107 = arith.addf %106, %105 : vector<8x128xf32>
    %108 = arith.divf %106, %107 : vector<8x128xf32>
    %109 = vector.extract_strided_slice %108 {offsets = [0, 0], sizes = [8, 32], strides = [1, 1]} : vector<8x128xf32> to vector<8x32xf32>
    %110 = vector.extract_strided_slice %108 {offsets = [0, 32], sizes = [8, 32], strides = [1, 1]} : vector<8x128xf32> to vector<8x32xf32>
    %111 = vector.extract_strided_slice %108 {offsets = [0, 96], sizes = [8, 32], strides = [1, 1]} : vector<8x128xf32> to vector<8x32xf32>
    %112 = vector.extract_strided_slice %103 {offsets = [0, 64], sizes = [8, 32], strides = [1, 1]} : vector<8x128xf32> to vector<8x32xf32>
    %113 = math.tanh %112 : vector<8x32xf32>
    %114 = arith.mulf %110, %98 : vector<8x32xf32>
    %115 = arith.mulf %109, %113 : vector<8x32xf32>
    %116 = arith.addf %114, %115 : vector<8x32xf32>
    %117 = math.tanh %116 : vector<8x32xf32>
    %118 = arith.mulf %111, %117 : vector<8x32xf32>
    %119 = vector.extract_strided_slice %8 {offsets = [48, 0], sizes = [8, 128], strides = [1, 1]} : vector<64x128xf32> to vector<8x128xf32>
    %cst_24 = arith.constant dense<0.000000e+00> : vector<8x128xf32>
    %120 = tpu.matmul %118, %0, %cst_24 {dimension_numbers = #tpu.dot_dimension_numbers<[1], [0], [0], [1], [0, 0, 1, 1], [], []>} : vector<8x32xf32>, vector<32x128xf32>, vector<8x128xf32> -> vector<8x128xf32>
    %121 = arith.addf %119, %120 : vector<8x128xf32>
    %122 = arith.negf %121 : vector<8x128xf32>
    %123 = math.exp %122 : vector<8x128xf32>
    %cst_25 = arith.constant 1.000000e+00 : f32
    %124 = vector.broadcast %cst_25 : f32 to vector<8x128xf32>
    %125 = arith.addf %124, %123 : vector<8x128xf32>
    %126 = arith.divf %124, %125 : vector<8x128xf32>
    %127 = vector.extract_strided_slice %126 {offsets = [0, 0], sizes = [8, 32], strides = [1, 1]} : vector<8x128xf32> to vector<8x32xf32>
    %128 = vector.extract_strided_slice %126 {offsets = [0, 32], sizes = [8, 32], strides = [1, 1]} : vector<8x128xf32> to vector<8x32xf32>
    %129 = vector.extract_strided_slice %126 {offsets = [0, 96], sizes = [8, 32], strides = [1, 1]} : vector<8x128xf32> to vector<8x32xf32>
    %130 = vector.extract_strided_slice %121 {offsets = [0, 64], sizes = [8, 32], strides = [1, 1]} : vector<8x128xf32> to vector<8x32xf32>
    %131 = math.tanh %130 : vector<8x32xf32>
    %132 = arith.mulf %128, %116 : vector<8x32xf32>
    %133 = arith.mulf %127, %131 : vector<8x32xf32>
    %134 = arith.addf %132, %133 : vector<8x32xf32>
    %135 = math.tanh %134 : vector<8x32xf32>
    %136 = arith.mulf %129, %135 : vector<8x32xf32>
    %137 = vector.extract_strided_slice %8 {offsets = [56, 0], sizes = [8, 128], strides = [1, 1]} : vector<64x128xf32> to vector<8x128xf32>
    %cst_26 = arith.constant dense<0.000000e+00> : vector<8x128xf32>
    %138 = tpu.matmul %136, %0, %cst_26 {dimension_numbers = #tpu.dot_dimension_numbers<[1], [0], [0], [1], [0, 0, 1, 1], [], []>} : vector<8x32xf32>, vector<32x128xf32>, vector<8x128xf32> -> vector<8x128xf32>
    %139 = arith.addf %137, %138 : vector<8x128xf32>
    %140 = arith.negf %139 : vector<8x128xf32>
    %141 = math.exp %140 : vector<8x128xf32>
    %cst_27 = arith.constant 1.000000e+00 : f32
    %142 = vector.broadcast %cst_27 : f32 to vector<8x128xf32>
    %143 = arith.addf %142, %141 : vector<8x128xf32>
    %144 = arith.divf %142, %143 : vector<8x128xf32>
    %145 = vector.extract_strided_slice %144 {offsets = [0, 0], sizes = [8, 32], strides = [1, 1]} : vector<8x128xf32> to vector<8x32xf32>
    %146 = vector.extract_strided_slice %144 {offsets = [0, 32], sizes = [8, 32], strides = [1, 1]} : vector<8x128xf32> to vector<8x32xf32>
    %147 = vector.extract_strided_slice %144 {offsets = [0, 96], sizes = [8, 32], strides = [1, 1]} : vector<8x128xf32> to vector<8x32xf32>
    %148 = vector.extract_strided_slice %139 {offsets = [0, 64], sizes = [8, 32], strides = [1, 1]} : vector<8x128xf32> to vector<8x32xf32>
    %149 = math.tanh %148 : vector<8x32xf32>
    %150 = arith.mulf %146, %134 : vector<8x32xf32>
    %151 = arith.mulf %145, %149 : vector<8x32xf32>
    %152 = arith.addf %150, %151 : vector<8x32xf32>
    %153 = math.tanh %152 : vector<8x32xf32>
    %154 = arith.mulf %147, %153 : vector<8x32xf32>
    %c0_28 = arith.constant 0 : index
    %c0_29 = arith.constant 0 : index
    %155 = vector.load %arg5[%c0_28, %c0_29] : memref<32x32xf32, #tpu.memory_space<vmem>>, vector<32x32xf32>
    %cst_30 = arith.constant dense<0.000000e+00> : vector<8x32xf32>
    %156 = tpu.matmul %154, %155, %cst_30 {dimension_numbers = #tpu.dot_dimension_numbers<[1], [0], [0], [1], [0, 0, 1, 1], [], []>} : vector<8x32xf32>, vector<32x32xf32>, vector<8x32xf32> -> vector<8x32xf32>
    %c0_31 = arith.constant 0 : index
    %c0_32 = arith.constant 0 : index
    %157 = vector.load %arg6[%c0_31, %c0_32] : memref<1x32xf32, #tpu.memory_space<vmem>>, vector<1x32xf32>
    %158 = vector.broadcast %157 : vector<1x32xf32> to vector<8x32xf32>
    %159 = arith.addf %156, %158 : vector<8x32xf32>
    %160 = arith.negf %159 : vector<8x32xf32>
    %161 = math.exp %160 : vector<8x32xf32>
    %cst_33 = arith.constant 1.000000e+00 : f32
    %162 = vector.broadcast %cst_33 : f32 to vector<8x32xf32>
    %163 = arith.addf %162, %161 : vector<8x32xf32>
    %164 = arith.divf %162, %163 : vector<8x32xf32>
    %165 = arith.mulf %154, %164 : vector<8x32xf32>
    %c0_34 = arith.constant 0 : index
    %c0_35 = arith.constant 0 : index
    %166 = vector.load %arg7[%c0_34, %c0_35] : memref<32x128xf32, #tpu.memory_space<vmem>>, vector<32x128xf32>
    %cst_36 = arith.constant dense<0.000000e+00> : vector<8x128xf32>
    %167 = tpu.matmul %165, %166, %cst_36 {dimension_numbers = #tpu.dot_dimension_numbers<[1], [0], [0], [1], [0, 0, 1, 1], [], []>} : vector<8x32xf32>, vector<32x128xf32>, vector<8x128xf32> -> vector<8x128xf32>
    %c0_37 = arith.constant 0 : index
    %c0_38 = arith.constant 0 : index
    %168 = vector.load %arg9[%c0_37, %c0_38] : memref<1x128xf32, #tpu.memory_space<vmem>>, vector<1x128xf32>
    %169 = vector.broadcast %168 : vector<1x128xf32> to vector<8x128xf32>
    %170 = arith.addf %167, %169 : vector<8x128xf32>
    %cst_39 = arith.constant 0.000000e+00 : f32
    %171 = vector.broadcast %cst_39 : f32 to vector<8x32xf32>
    %cst_40 = arith.constant 0.000000e+00 : f32
    %172 = vector.broadcast %cst_40 : f32 to vector<8x32xf32>
    %cst_41 = arith.constant dense<0.000000e+00> : vector<8x128xf32>
    %173 = tpu.matmul %171, %1, %cst_41 {dimension_numbers = #tpu.dot_dimension_numbers<[1], [0], [0], [1], [0, 0, 1, 1], [], []>} : vector<8x32xf32>, vector<32x128xf32>, vector<8x128xf32> -> vector<8x128xf32>
    %174 = arith.addf %170, %173 : vector<8x128xf32>
    %175 = arith.negf %174 : vector<8x128xf32>
    %176 = math.exp %175 : vector<8x128xf32>
    %cst_42 = arith.constant 1.000000e+00 : f32
    %177 = vector.broadcast %cst_42 : f32 to vector<8x128xf32>
    %178 = arith.addf %177, %176 : vector<8x128xf32>
    %179 = arith.divf %177, %178 : vector<8x128xf32>
    %180 = vector.extract_strided_slice %179 {offsets = [0, 0], sizes = [8, 32], strides = [1, 1]} : vector<8x128xf32> to vector<8x32xf32>
    %181 = vector.extract_strided_slice %179 {offsets = [0, 32], sizes = [8, 32], strides = [1, 1]} : vector<8x128xf32> to vector<8x32xf32>
    %182 = vector.extract_strided_slice %179 {offsets = [0, 96], sizes = [8, 32], strides = [1, 1]} : vector<8x128xf32> to vector<8x32xf32>
    %183 = vector.extract_strided_slice %174 {offsets = [0, 64], sizes = [8, 32], strides = [1, 1]} : vector<8x128xf32> to vector<8x32xf32>
    %184 = math.tanh %183 : vector<8x32xf32>
    %185 = arith.mulf %181, %172 : vector<8x32xf32>
    %186 = arith.mulf %180, %184 : vector<8x32xf32>
    %187 = arith.addf %185, %186 : vector<8x32xf32>
    %188 = math.tanh %187 : vector<8x32xf32>
    %189 = arith.mulf %182, %188 : vector<8x32xf32>
    %cst_43 = arith.constant dense<0.000000e+00> : vector<8x128xf32>
    %190 = tpu.matmul %189, %1, %cst_43 {dimension_numbers = #tpu.dot_dimension_numbers<[1], [0], [0], [1], [0, 0, 1, 1], [], []>} : vector<8x32xf32>, vector<32x128xf32>, vector<8x128xf32> -> vector<8x128xf32>
    %191 = arith.addf %170, %190 : vector<8x128xf32>
    %192 = arith.negf %191 : vector<8x128xf32>
    %193 = math.exp %192 : vector<8x128xf32>
    %cst_44 = arith.constant 1.000000e+00 : f32
    %194 = vector.broadcast %cst_44 : f32 to vector<8x128xf32>
    %195 = arith.addf %194, %193 : vector<8x128xf32>
    %196 = arith.divf %194, %195 : vector<8x128xf32>
    %197 = vector.extract_strided_slice %196 {offsets = [0, 0], sizes = [8, 32], strides = [1, 1]} : vector<8x128xf32> to vector<8x32xf32>
    %198 = vector.extract_strided_slice %196 {offsets = [0, 32], sizes = [8, 32], strides = [1, 1]} : vector<8x128xf32> to vector<8x32xf32>
    %199 = vector.extract_strided_slice %196 {offsets = [0, 96], sizes = [8, 32], strides = [1, 1]} : vector<8x128xf32> to vector<8x32xf32>
    %200 = vector.extract_strided_slice %191 {offsets = [0, 64], sizes = [8, 32], strides = [1, 1]} : vector<8x128xf32> to vector<8x32xf32>
    %201 = math.tanh %200 : vector<8x32xf32>
    %202 = arith.mulf %198, %187 : vector<8x32xf32>
    %203 = arith.mulf %197, %201 : vector<8x32xf32>
    %204 = arith.addf %202, %203 : vector<8x32xf32>
    %205 = math.tanh %204 : vector<8x32xf32>
    %206 = arith.mulf %199, %205 : vector<8x32xf32>
    %cst_45 = arith.constant dense<0.000000e+00> : vector<8x128xf32>
    %207 = tpu.matmul %206, %1, %cst_45 {dimension_numbers = #tpu.dot_dimension_numbers<[1], [0], [0], [1], [0, 0, 1, 1], [], []>} : vector<8x32xf32>, vector<32x128xf32>, vector<8x128xf32> -> vector<8x128xf32>
    %208 = arith.addf %170, %207 : vector<8x128xf32>
    %209 = arith.negf %208 : vector<8x128xf32>
    %210 = math.exp %209 : vector<8x128xf32>
    %cst_46 = arith.constant 1.000000e+00 : f32
    %211 = vector.broadcast %cst_46 : f32 to vector<8x128xf32>
    %212 = arith.addf %211, %210 : vector<8x128xf32>
    %213 = arith.divf %211, %212 : vector<8x128xf32>
    %214 = vector.extract_strided_slice %213 {offsets = [0, 0], sizes = [8, 32], strides = [1, 1]} : vector<8x128xf32> to vector<8x32xf32>
    %215 = vector.extract_strided_slice %213 {offsets = [0, 32], sizes = [8, 32], strides = [1, 1]} : vector<8x128xf32> to vector<8x32xf32>
    %216 = vector.extract_strided_slice %213 {offsets = [0, 96], sizes = [8, 32], strides = [1, 1]} : vector<8x128xf32> to vector<8x32xf32>
    %217 = vector.extract_strided_slice %208 {offsets = [0, 64], sizes = [8, 32], strides = [1, 1]} : vector<8x128xf32> to vector<8x32xf32>
    %218 = math.tanh %217 : vector<8x32xf32>
    %219 = arith.mulf %215, %204 : vector<8x32xf32>
    %220 = arith.mulf %214, %218 : vector<8x32xf32>
    %221 = arith.addf %219, %220 : vector<8x32xf32>
    %222 = math.tanh %221 : vector<8x32xf32>
    %223 = arith.mulf %216, %222 : vector<8x32xf32>
    %cst_47 = arith.constant dense<0.000000e+00> : vector<8x128xf32>
    %224 = tpu.matmul %223, %1, %cst_47 {dimension_numbers = #tpu.dot_dimension_numbers<[1], [0], [0], [1], [0, 0, 1, 1], [], []>} : vector<8x32xf32>, vector<32x128xf32>, vector<8x128xf32> -> vector<8x128xf32>
    %225 = arith.addf %170, %224 : vector<8x128xf32>
    %226 = arith.negf %225 : vector<8x128xf32>
    %227 = math.exp %226 : vector<8x128xf32>
    %cst_48 = arith.constant 1.000000e+00 : f32
    %228 = vector.broadcast %cst_48 : f32 to vector<8x128xf32>
    %229 = arith.addf %228, %227 : vector<8x128xf32>
    %230 = arith.divf %228, %229 : vector<8x128xf32>
    %231 = vector.extract_strided_slice %230 {offsets = [0, 0], sizes = [8, 32], strides = [1, 1]} : vector<8x128xf32> to vector<8x32xf32>
    %232 = vector.extract_strided_slice %230 {offsets = [0, 32], sizes = [8, 32], strides = [1, 1]} : vector<8x128xf32> to vector<8x32xf32>
    %233 = vector.extract_strided_slice %230 {offsets = [0, 96], sizes = [8, 32], strides = [1, 1]} : vector<8x128xf32> to vector<8x32xf32>
    %234 = vector.extract_strided_slice %225 {offsets = [0, 64], sizes = [8, 32], strides = [1, 1]} : vector<8x128xf32> to vector<8x32xf32>
    %235 = math.tanh %234 : vector<8x32xf32>
    %236 = arith.mulf %232, %221 : vector<8x32xf32>
    %237 = arith.mulf %231, %235 : vector<8x32xf32>
    %238 = arith.addf %236, %237 : vector<8x32xf32>
    %239 = math.tanh %238 : vector<8x32xf32>
    %240 = arith.mulf %233, %239 : vector<8x32xf32>
    %cst_49 = arith.constant dense<0.000000e+00> : vector<8x128xf32>
    %241 = tpu.matmul %240, %1, %cst_49 {dimension_numbers = #tpu.dot_dimension_numbers<[1], [0], [0], [1], [0, 0, 1, 1], [], []>} : vector<8x32xf32>, vector<32x128xf32>, vector<8x128xf32> -> vector<8x128xf32>
    %242 = arith.addf %170, %241 : vector<8x128xf32>
    %243 = arith.negf %242 : vector<8x128xf32>
    %244 = math.exp %243 : vector<8x128xf32>
    %cst_50 = arith.constant 1.000000e+00 : f32
    %245 = vector.broadcast %cst_50 : f32 to vector<8x128xf32>
    %246 = arith.addf %245, %244 : vector<8x128xf32>
    %247 = arith.divf %245, %246 : vector<8x128xf32>
    %248 = vector.extract_strided_slice %247 {offsets = [0, 0], sizes = [8, 32], strides = [1, 1]} : vector<8x128xf32> to vector<8x32xf32>
    %249 = vector.extract_strided_slice %247 {offsets = [0, 32], sizes = [8, 32], strides = [1, 1]} : vector<8x128xf32> to vector<8x32xf32>
    %250 = vector.extract_strided_slice %247 {offsets = [0, 96], sizes = [8, 32], strides = [1, 1]} : vector<8x128xf32> to vector<8x32xf32>
    %251 = vector.extract_strided_slice %242 {offsets = [0, 64], sizes = [8, 32], strides = [1, 1]} : vector<8x128xf32> to vector<8x32xf32>
    %252 = math.tanh %251 : vector<8x32xf32>
    %253 = arith.mulf %249, %238 : vector<8x32xf32>
    %254 = arith.mulf %248, %252 : vector<8x32xf32>
    %255 = arith.addf %253, %254 : vector<8x32xf32>
    %256 = math.tanh %255 : vector<8x32xf32>
    %257 = arith.mulf %250, %256 : vector<8x32xf32>
    %cst_51 = arith.constant dense<0.000000e+00> : vector<8x128xf32>
    %258 = tpu.matmul %257, %1, %cst_51 {dimension_numbers = #tpu.dot_dimension_numbers<[1], [0], [0], [1], [0, 0, 1, 1], [], []>} : vector<8x32xf32>, vector<32x128xf32>, vector<8x128xf32> -> vector<8x128xf32>
    %259 = arith.addf %170, %258 : vector<8x128xf32>
    %260 = arith.negf %259 : vector<8x128xf32>
    %261 = math.exp %260 : vector<8x128xf32>
    %cst_52 = arith.constant 1.000000e+00 : f32
    %262 = vector.broadcast %cst_52 : f32 to vector<8x128xf32>
    %263 = arith.addf %262, %261 : vector<8x128xf32>
    %264 = arith.divf %262, %263 : vector<8x128xf32>
    %265 = vector.extract_strided_slice %264 {offsets = [0, 0], sizes = [8, 32], strides = [1, 1]} : vector<8x128xf32> to vector<8x32xf32>
    %266 = vector.extract_strided_slice %264 {offsets = [0, 32], sizes = [8, 32], strides = [1, 1]} : vector<8x128xf32> to vector<8x32xf32>
    %267 = vector.extract_strided_slice %264 {offsets = [0, 96], sizes = [8, 32], strides = [1, 1]} : vector<8x128xf32> to vector<8x32xf32>
    %268 = vector.extract_strided_slice %259 {offsets = [0, 64], sizes = [8, 32], strides = [1, 1]} : vector<8x128xf32> to vector<8x32xf32>
    %269 = math.tanh %268 : vector<8x32xf32>
    %270 = arith.mulf %266, %255 : vector<8x32xf32>
    %271 = arith.mulf %265, %269 : vector<8x32xf32>
    %272 = arith.addf %270, %271 : vector<8x32xf32>
    %273 = math.tanh %272 : vector<8x32xf32>
    %274 = arith.mulf %267, %273 : vector<8x32xf32>
    %cst_53 = arith.constant dense<0.000000e+00> : vector<8x128xf32>
    %275 = tpu.matmul %274, %1, %cst_53 {dimension_numbers = #tpu.dot_dimension_numbers<[1], [0], [0], [1], [0, 0, 1, 1], [], []>} : vector<8x32xf32>, vector<32x128xf32>, vector<8x128xf32> -> vector<8x128xf32>
    %276 = arith.addf %170, %275 : vector<8x128xf32>
    %277 = arith.negf %276 : vector<8x128xf32>
    %278 = math.exp %277 : vector<8x128xf32>
    %cst_54 = arith.constant 1.000000e+00 : f32
    %279 = vector.broadcast %cst_54 : f32 to vector<8x128xf32>
    %280 = arith.addf %279, %278 : vector<8x128xf32>
    %281 = arith.divf %279, %280 : vector<8x128xf32>
    %282 = vector.extract_strided_slice %281 {offsets = [0, 0], sizes = [8, 32], strides = [1, 1]} : vector<8x128xf32> to vector<8x32xf32>
    %283 = vector.extract_strided_slice %281 {offsets = [0, 32], sizes = [8, 32], strides = [1, 1]} : vector<8x128xf32> to vector<8x32xf32>
    %284 = vector.extract_strided_slice %281 {offsets = [0, 96], sizes = [8, 32], strides = [1, 1]} : vector<8x128xf32> to vector<8x32xf32>
    %285 = vector.extract_strided_slice %276 {offsets = [0, 64], sizes = [8, 32], strides = [1, 1]} : vector<8x128xf32> to vector<8x32xf32>
    %286 = math.tanh %285 : vector<8x32xf32>
    %287 = arith.mulf %283, %272 : vector<8x32xf32>
    %288 = arith.mulf %282, %286 : vector<8x32xf32>
    %289 = arith.addf %287, %288 : vector<8x32xf32>
    %290 = math.tanh %289 : vector<8x32xf32>
    %291 = arith.mulf %284, %290 : vector<8x32xf32>
    %cst_55 = arith.constant dense<0.000000e+00> : vector<8x128xf32>
    %292 = tpu.matmul %291, %1, %cst_55 {dimension_numbers = #tpu.dot_dimension_numbers<[1], [0], [0], [1], [0, 0, 1, 1], [], []>} : vector<8x32xf32>, vector<32x128xf32>, vector<8x128xf32> -> vector<8x128xf32>
    %293 = arith.addf %170, %292 : vector<8x128xf32>
    %294 = arith.negf %293 : vector<8x128xf32>
    %295 = math.exp %294 : vector<8x128xf32>
    %cst_56 = arith.constant 1.000000e+00 : f32
    %296 = vector.broadcast %cst_56 : f32 to vector<8x128xf32>
    %297 = arith.addf %296, %295 : vector<8x128xf32>
    %298 = arith.divf %296, %297 : vector<8x128xf32>
    %299 = vector.extract_strided_slice %298 {offsets = [0, 0], sizes = [8, 32], strides = [1, 1]} : vector<8x128xf32> to vector<8x32xf32>
    %300 = vector.extract_strided_slice %298 {offsets = [0, 32], sizes = [8, 32], strides = [1, 1]} : vector<8x128xf32> to vector<8x32xf32>
    %301 = vector.extract_strided_slice %298 {offsets = [0, 96], sizes = [8, 32], strides = [1, 1]} : vector<8x128xf32> to vector<8x32xf32>
    %302 = vector.extract_strided_slice %293 {offsets = [0, 64], sizes = [8, 32], strides = [1, 1]} : vector<8x128xf32> to vector<8x32xf32>
    %303 = math.tanh %302 : vector<8x32xf32>
    %304 = arith.mulf %300, %289 : vector<8x32xf32>
    %305 = arith.mulf %299, %303 : vector<8x32xf32>
    %306 = arith.addf %304, %305 : vector<8x32xf32>
    %307 = math.tanh %306 : vector<8x32xf32>
    %308 = arith.mulf %301, %307 : vector<8x32xf32>
    %309 = tpu.concatenate %189, %206, %223, %240, %257, %274, %291, %308 in 0 : vector<8x32xf32>, vector<8x32xf32>, vector<8x32xf32>, vector<8x32xf32>, vector<8x32xf32>, vector<8x32xf32>, vector<8x32xf32>, vector<8x32xf32> -> vector<64x32xf32>
    %c0_57 = arith.constant 0 : index
    %c0_58 = arith.constant 0 : index
    %310 = vector.load %arg10[%c0_57, %c0_58] : memref<32x8xf32, #tpu.memory_space<vmem>>, vector<32x8xf32>
    %cst_59 = arith.constant dense<0.000000e+00> : vector<64x8xf32>
    %311 = tpu.matmul %309, %310, %cst_59 {dimension_numbers = #tpu.dot_dimension_numbers<[1], [0], [0], [1], [0, 0, 1, 1], [], []>} : vector<64x32xf32>, vector<32x8xf32>, vector<64x8xf32> -> vector<64x8xf32>
    %c0_60 = arith.constant 0 : index
    %c0_61 = arith.constant 0 : index
    %312 = vector.load %arg11[%c0_60, %c0_61] : memref<1x8xf32, #tpu.memory_space<vmem>>, vector<1x8xf32>
    %313 = vector.broadcast %312 : vector<1x8xf32> to vector<64x8xf32>
    %314 = arith.addf %311, %313 : vector<64x8xf32>
    %315 = vector.shape_cast %314 : vector<64x8xf32> to vector<8x8x8xf32>
    %c0_62 = arith.constant 0 : index
    %c0_63 = arith.constant 0 : index
    %c0_64 = arith.constant 0 : index
    %316 = vector.load %arg12[%c0_62, %c0_63, %c0_64] : memref<8x8x8xf32, #tpu.memory_space<vmem>>, vector<8x8x8xf32>
    tpu.vector_store %arg12[%c0_62, %c0_63, %c0_64], %315 {strides = array<i32>} : memref<8x8x8xf32, #tpu.memory_space<vmem>>, vector<8x8x8xf32>,
    return
  }
  func.func @transform_0(%arg0: i32) -> (i32, i32, i32) {
    %c0_i32 = arith.constant 0 : i32
    %c0_i32_0 = arith.constant 0 : i32
    %c0_i32_1 = arith.constant 0 : i32
    return %c0_i32, %arg0, %c0_i32_0 : i32, i32, i32
  }
  func.func @transform_1(%arg0: i32) -> (i32, i32) {
    %c0_i32 = arith.constant 0 : i32
    %c0_i32_0 = arith.constant 0 : i32
    %c0_i32_1 = arith.constant 0 : i32
    return %c0_i32, %c0_i32_0 : i32, i32
  }
  func.func @transform_2(%arg0: i32) -> (i32, i32) {
    %c0_i32 = arith.constant 0 : i32
    %c0_i32_0 = arith.constant 0 : i32
    %c0_i32_1 = arith.constant 0 : i32
    return %c0_i32, %c0_i32_0 : i32, i32
  }
  func.func @transform_3(%arg0: i32) -> (i32, i32) {
    %c0_i32 = arith.constant 0 : i32
    %c0_i32_0 = arith.constant 0 : i32
    %c0_i32_1 = arith.constant 0 : i32
    return %c0_i32, %c0_i32_0 : i32, i32
  }
  func.func @transform_4(%arg0: i32) -> (i32, i32) {
    %c0_i32 = arith.constant 0 : i32
    %c0_i32_0 = arith.constant 0 : i32
    %c0_i32_1 = arith.constant 0 : i32
    return %c0_i32, %c0_i32_0 : i32, i32
  }
  func.func @transform_5(%arg0: i32) -> (i32, i32) {
    %c0_i32 = arith.constant 0 : i32
    %c0_i32_0 = arith.constant 0 : i32
    %c0_i32_1 = arith.constant 0 : i32
    return %c0_i32, %c0_i32_0 : i32, i32
  }
  func.func @transform_6(%arg0: i32) -> (i32, i32) {
    %c0_i32 = arith.constant 0 : i32
    %c0_i32_0 = arith.constant 0 : i32
    %c0_i32_1 = arith.constant 0 : i32
    return %c0_i32, %c0_i32_0 : i32, i32
  }
  func.func @transform_7(%arg0: i32) -> (i32, i32) {
    %c0_i32 = arith.constant 0 : i32
    %c0_i32_0 = arith.constant 0 : i32
    %c0_i32_1 = arith.constant 0 : i32
    return %c0_i32, %c0_i32_0 : i32, i32
  }
  func.func @transform_8(%arg0: i32) -> (i32, i32) {
    %c0_i32 = arith.constant 0 : i32
    %c0_i32_0 = arith.constant 0 : i32
    %c0_i32_1 = arith.constant 0 : i32
    return %c0_i32, %c0_i32_0 : i32, i32
  }
  func.func @transform_9(%arg0: i32) -> (i32, i32) {
    %c0_i32 = arith.constant 0 : i32
    %c0_i32_0 = arith.constant 0 : i32
    %c0_i32_1 = arith.constant 0 : i32
    return %c0_i32, %c0_i32_0 : i32, i32
  }
  func.func @transform_10(%arg0: i32) -> (i32, i32) {
    %c0_i32 = arith.constant 0 : i32
    %c0_i32_0 = arith.constant 0 : i32
    %c0_i32_1 = arith.constant 0 : i32
    return %c0_i32, %c0_i32_0 : i32, i32
  }
  func.func @transform_11(%arg0: i32) -> (i32, i32, i32) {
    %c0_i32 = arith.constant 0 : i32
    %c0_i32_0 = arith.constant 0 : i32
    %c0_i32_1 = arith.constant 0 : i32
    return %c0_i32, %arg0, %c0_i32_0 : i32, i32, i32
  }
}

</mosaic_0001>

<llo_original>
// kernel: tpu_custom_call.1
$region0: #{tpu_custom_call.1}
  #allocation0 [shape = 'u32[]', space=smem, size = 0x4, offset = 0x4, fixed_abs, tag = 'smem constant byte address 0x4 - core index']
  #allocation1 [shape = 'u32[144,128]{1,0:T(1,128)}', space=vmem, size = 0x12000, scoped, tag = 'internal scratch']
  %s0 = inlined_call_operand.hbm [shape: f32[8,8,8], index: 0, kind: input, shape index: {}]
  %s1 = inlined_call_operand.vmem [shape: f32[8,128], index: 1, kind: input, shape index: {}]
  %s2 = inlined_call_operand.vmem [shape: f32[32,128], index: 2, kind: input, shape index: {}]
  %s3 = inlined_call_operand.vmem [shape: f32[1,128], index: 3, kind: input, shape index: {}]
  %s4 = inlined_call_operand.hbm [shape: f32[32,32], index: 4, kind: input, shape index: {}]
  %s5 = inlined_call_operand.vmem [shape: f32[1,32], index: 5, kind: input, shape index: {}]
  %s6 = inlined_call_operand.hbm [shape: f32[32,128], index: 6, kind: input, shape index: {}]
  %s7 = inlined_call_operand.hbm [shape: f32[32,128], index: 7, kind: input, shape index: {}]
  %s8 = inlined_call_operand.vmem [shape: f32[1,128], index: 8, kind: input, shape index: {}]
  %s9 = inlined_call_operand.vmem [shape: f32[32,8], index: 9, kind: input, shape index: {}]
  %s10 = inlined_call_operand.vmem [shape: f32[1,8], index: 10, kind: input, shape index: {}]
  %s11 = inlined_call_operand.hbm [shape: f32[8,8,8], index: 11, kind: output, shape index: {}]
  %s12 = sld [smem:[#allocation0]]
  $region70: #{tpu_custom_call.1} parent=0
    _
  %s14 = ssub.s32 1, %s12
  %s15 = scalar_select 0, %s14, %s12
  $region1: #{tpu_custom_call.1} parent=0
    #allocation2 [shape = 'u8[32768]{0}', space=vmem, size = 0x8000, scoped, tag = 'input window, operand 0, single buffered']
    #allocation3 [shape = 's32[1]{0}', space=sflag, size = 0x4, scoped, tag = 'scoped memory for tpu_custom_call.1']
    #allocation4 [shape = 's32[1]{0}', space=sflag, size = 0x4, scoped, tag = 'scoped memory for tpu_custom_call.1']
    #allocation5 [shape = 'u8[16384]{0}', space=vmem, size = 0x4000, scoped, tag = 'input window, operand 4, single buffered']
    #allocation6 [shape = 's32[1]{0}', space=sflag, size = 0x4, scoped, tag = 'scoped memory for tpu_custom_call.1']
    #allocation7 [shape = 'u8[16384]{0}', space=vmem, size = 0x4000, scoped, tag = 'input window, operand 6, single buffered']
    #allocation8 [shape = 'u8[16384]{0}', space=vmem, size = 0x4000, scoped, tag = 'input window, operand 7, single buffered']
    #allocation9 [shape = 's32[1]{0}', space=sflag, size = 0x4, scoped, tag = 'scoped memory for tpu_custom_call.1']
    #allocation10 [shape = 'u8[32768]{0}', space=vmem, size = 0x8000, scoped, tag = 'output window, operand 0, single buffered']
    %16 = vsyncpa [#allocation3], 0
    %17 = vsyncpa [#allocation6], 0
    %18 = vsyncpa [#allocation9], 0
    %19 = vsyncpa [#allocation4], 0
    // Predicated region
    $region2: #{tpu_custom_call.1} parent=1 // pred_check
      _
    $region3: #{tpu_custom_call.1} parent=1 // pred_check_branch
      %21 = sbr.rel (0) target = $region5
    $region4: #{tpu_custom_call.1} parent=1 // pred_region
      %s23 = ssub.s32 1024, 1024
      %24 = vsyncadd [#allocation3], %s23
      %s25 = sshll.u32 [#allocation2], 4
      %s26 = int_to_ptr.vmem [resolvable:$true] %s25
      %31 = dma.hbm_to_vmem [thread:$0]  %s0, 1024, %s26, [#allocation3], 128, 128, 8
    $region5: #{tpu_custom_call.1} parent=1 // pred_fallthru
      _
    // Predicated region
    $region6: #{tpu_custom_call.1} parent=1 // pred_check
      _
    $region7: #{tpu_custom_call.1} parent=1 // pred_check_branch
      %33 = sbr.rel (0) target = $region9
    $region8: #{tpu_custom_call.1} parent=1 // pred_region
      _
    $region9: #{tpu_custom_call.1} parent=1 // pred_fallthru
      _
    // Predicated region
    $region10: #{tpu_custom_call.1} parent=1 // pred_check
      _
    $region11: #{tpu_custom_call.1} parent=1 // pred_check_branch
      %35 = sbr.rel (0) target = $region13
    $region12: #{tpu_custom_call.1} parent=1 // pred_region
      _
    $region13: #{tpu_custom_call.1} parent=1 // pred_fallthru
      _
    // Predicated region
    $region14: #{tpu_custom_call.1} parent=1 // pred_check
      _
    $region15: #{tpu_custom_call.1} parent=1 // pred_check_branch
      %37 = sbr.rel (0) target = $region17
    $region16: #{tpu_custom_call.1} parent=1 // pred_region
      _
    $region17: #{tpu_custom_call.1} parent=1 // pred_fallthru
      _
    // Predicated region
    $region18: #{tpu_custom_call.1} parent=1 // pred_check
      _
    $region19: #{tpu_custom_call.1} parent=1 // pred_check_branch
      %39 = sbr.rel (0) target = $region21
    $region20: #{tpu_custom_call.1} parent=1 // pred_region
      %s41 = ssub.s32 512, 512
      %42 = vsyncadd [#allocation6], %s41
      %s43 = sshll.u32 [#allocation5], 4
      %s44 = int_to_ptr.vmem [resolvable:$true] %s43
      %49 = dma.hbm_to_vmem [thread:$0]  %s4, 512, %s44, [#allocation6], 128, 128, 8
    $region21: #{tpu_custom_call.1} parent=1 // pred_fallthru
      _
    // Predicated region
    $region22: #{tpu_custom_call.1} parent=1 // pred_check
      _
    $region23: #{tpu_custom_call.1} parent=1 // pred_check_branch
      %51 = sbr.rel (0) target = $region25
    $region24: #{tpu_custom_call.1} parent=1 // pred_region
      _
    $region25: #{tpu_custom_call.1} parent=1 // pred_fallthru
      _
    // Predicated region
    $region26: #{tpu_custom_call.1} parent=1 // pred_check
      _
    $region27: #{tpu_custom_call.1} parent=1 // pred_check_branch
      %53 = sbr.rel (0) target = $region29
    $region28: #{tpu_custom_call.1} parent=1 // pred_region
      %s55 = ssub.s32 512, 512
      %56 = vsyncadd [#allocation6], %s55
      %s57 = sshll.u32 [#allocation7], 4
      %s58 = int_to_ptr.vmem [resolvable:$true] %s57
      %63 = dma.hbm_to_vmem [thread:$0]  %s6, 512, %s58, [#allocation6], 128, 128, 8
    $region29: #{tpu_custom_call.1} parent=1 // pred_fallthru
      _
    // Predicated region
    $region30: #{tpu_custom_call.1} parent=1 // pred_check
      _
    $region31: #{tpu_custom_call.1} parent=1 // pred_check_branch
      %65 = sbr.rel (0) target = $region33
    $region32: #{tpu_custom_call.1} parent=1 // pred_region
      %s67 = ssub.s32 512, 512
      %68 = vsyncadd [#allocation9], %s67
      %s69 = sshll.u32 [#allocation8], 4
      %s70 = int_to_ptr.vmem [resolvable:$true] %s69
      %75 = dma.hbm_to_vmem [thread:$0]  %s7, 512, %s70, [#allocation9], 128, 128, 8
    $region33: #{tpu_custom_call.1} parent=1 // pred_fallthru
      _
    // Predicated region
    $region34: #{tpu_custom_call.1} parent=1 // pred_check
      _
    $region35: #{tpu_custom_call.1} parent=1 // pred_check_branch
      %77 = sbr.rel (0) target = $region37
    $region36: #{tpu_custom_call.1} parent=1 // pred_region
      _
    $region37: #{tpu_custom_call.1} parent=1 // pred_fallthru
      _
    // Predicated region
    $region38: #{tpu_custom_call.1} parent=1 // pred_check
      _
    $region39: #{tpu_custom_call.1} parent=1 // pred_check_branch
      %79 = sbr.rel (0) target = $region41
    $region40: #{tpu_custom_call.1} parent=1 // pred_region
      _
    $region41: #{tpu_custom_call.1} parent=1 // pred_fallthru
      _
    // Predicated region
    $region42: #{tpu_custom_call.1} parent=1 // pred_check
      _
    $region43: #{tpu_custom_call.1} parent=1 // pred_check_branch
      %81 = sbr.rel (0) target = $region45
    $region44: #{tpu_custom_call.1} parent=1 // pred_region
      _
    $region45: #{tpu_custom_call.1} parent=1 // pred_fallthru
      _
    // Predicated region
    $region46: #{tpu_custom_call.1} parent=1 // pred_check
      _
    $region47: #{tpu_custom_call.1} parent=1 // pred_check_branch
      %83 = sbr.rel (0) target = $region49
    $region48: #{tpu_custom_call.1} parent=1 // pred_region
      %84 = dma.done [#allocation3], 1024
    $region49: #{tpu_custom_call.1} parent=1 // pred_fallthru
      _
    // Predicated region
    $region50: #{tpu_custom_call.1} parent=1 // pred_check
      _
    $region51: #{tpu_custom_call.1} parent=1 // pred_check_branch
      %86 = sbr.rel (0) target = $region53
    $region52: #{tpu_custom_call.1} parent=1 // pred_region
      %87 = dma.done [#allocation6], 512
    $region53: #{tpu_custom_call.1} parent=1 // pred_fallthru
      _
    // Predicated region
    $region54: #{tpu_custom_call.1} parent=1 // pred_check
      _
    $region55: #{tpu_custom_call.1} parent=1 // pred_check_branch
      %89 = sbr.rel (0) target = $region57
    $region56: #{tpu_custom_call.1} parent=1 // pred_region
      %90 = dma.done [#allocation6], 512
    $region57: #{tpu_custom_call.1} parent=1 // pred_fallthru
      _
    // Predicated region
    $region58: #{tpu_custom_call.1} parent=1 // pred_check
      _
    $region59: #{tpu_custom_call.1} parent=1 // pred_check_branch
      %92 = sbr.rel (0) target = $region61
    $region60: #{tpu_custom_call.1} parent=1 // pred_region
      %93 = dma.done [#allocation9], 512
    $region61: #{tpu_custom_call.1} parent=1 // pred_fallthru
      _
    %v94 = vld [vmem:[%s2] sm:$0xff]
    %v95 = vld [vmem:[%s2 + $0x8] sm:$0xff]
    %v96 = vld [vmem:[%s2 + $0x10] sm:$0xff]
    %v97 = vld [vmem:[%s2 + $0x18] sm:$0xff]
    %v98 = vld [vmem:[#allocation8] sm:$0xff]
    %v99 = vld [vmem:[#allocation8 + $0x8] sm:$0xff]
    %v100 = vld [vmem:[#allocation8 + $0x10] sm:$0xff]
    %v101 = vld [vmem:[#allocation8 + $0x18] sm:$0xff]
    %v102 = vld [vmem:[#allocation2] sm:$0xff]
    %v103 = vld [vmem:[#allocation2 + $0x8] sm:$0xff]
    %v104 = vld [vmem:[#allocation2 + $0x10] sm:$0xff]
    %v105 = vld [vmem:[#allocation2 + $0x18] sm:$0xff]
    %v106 = vld [vmem:[#allocation2 + $0x20] sm:$0xff]
    %v107 = vld [vmem:[#allocation2 + $0x28] sm:$0xff]
    %v108 = vld [vmem:[#allocation2 + $0x30] sm:$0xff]
    %v109 = vld [vmem:[#allocation2 + $0x38] sm:$0xff]
    %v110 = vld [vmem:[%s1] sm:$0xff]
    %v111 = vld [vmem:[%s3] sm:$0x1]
    %v113 = vlaneseq
    %v114 = vshrl.u32 %v113, 7
    %v115 = vsub.s32 0, %v114
    %v116 = vrot.slane %v111, %v115
    %vm118 = vcmask 64512
    %v120 = vsel %vm118, %v102, 0
    %v123 = vsel %vm118, %v103, 0
    %v126 = vsel %vm118, %v104, 0
    %v129 = vsel %vm118, %v105, 0
    %v132 = vsel %vm118, %v106, 0
    %v135 = vsel %vm118, %v107, 0
    %v138 = vsel %vm118, %v108, 0
    %v141 = vsel %vm118, %v109, 0
    %143 = vmatprep.subr.mxu0 0.0
    %144 = vmatpush1.msra.mxu0 0.0
    %145 = vmatprep.subr.mxu0 0.0
    %146 = vmatpush1.msra.mxu0 0.0
    %147 = vmatprep.subr.mxu0 0.0
    %148 = vmatpush1.msra.mxu0 0.0
    %149 = vmatprep.subr.mxu0 0.0
    %150 = vmatpush1.msra.mxu0 0.0
    %151 = vmatprep.subr.mxu0 0.0
    %152 = vmatpush1.msra.mxu0 0.0
    %153 = vmatprep.subr.mxu0 0.0
    %154 = vmatpush1.msra.mxu0 0.0
    %155 = vmatprep.subr.mxu0 0.0
    %156 = vmatpush1.msra.mxu0 0.0
    %157 = vmatprep.subr.mxu0 0.0
    %158 = vmatpush1.msra.mxu0 0.0
    %159 = vmatprep.subr.mxu0 0.0
    %160 = vmatpush1.msra.mxu0 0.0
    %161 = vmatprep.subr.mxu0 0.0
    %162 = vmatpush1.msra.mxu0 0.0
    %163 = vmatprep.subr.mxu0 0.0
    %164 = vmatpush1.msra.mxu0 0.0
    %165 = vmatprep.subr.mxu0 0.0
    %166 = vmatpush1.msra.mxu0 0.0
    %167 = vmatprep.subr.mxu0 0.0
    %168 = vmatpush1.msra.mxu0 0.0
    %169 = vmatprep.subr.mxu0 0.0
    %170 = vmatpush1.msra.mxu0 0.0
    %171 = vmatprep.subr.mxu0 0.0
    %172 = vmatpush1.msra.mxu0 0.0
    %173 = vmatprep.subr.mxu0 0.0
    %174 = vmatpush1.msra.mxu0 %v110
    %175 = vmatprep.subr.mxu0 0.0
    %176 = vmatpush2.msra.mxu0 0.0
    %177 = vmatprep.subr.mxu0 0.0
    %178 = vmatpush2.msra.mxu0 0.0
    %179 = vmatprep.subr.mxu0 0.0
    %180 = vmatpush2.msra.mxu0 0.0
    %181 = vmatprep.subr.mxu0 0.0
    %182 = vmatpush2.msra.mxu0 0.0
    %183 = vmatprep.subr.mxu0 0.0
    %184 = vmatpush2.msra.mxu0 0.0
    %185 = vmatprep.subr.mxu0 0.0
    %186 = vmatpush2.msra.mxu0 0.0
    %187 = vmatprep.subr.mxu0 0.0
    %188 = vmatpush2.msra.mxu0 0.0
    %189 = vmatprep.subr.mxu0 0.0
    %190 = vmatpush2.msra.mxu0 0.0
    %191 = vmatprep.subr.mxu0 0.0
    %192 = vmatpush2.msra.mxu0 0.0
    %193 = vmatprep.subr.mxu0 0.0
    %194 = vmatpush2.msra.mxu0 0.0
    %195 = vmatprep.subr.mxu0 0.0
    %196 = vmatpush2.msra.mxu0 0.0
    %197 = vmatprep.subr.mxu0 0.0
    %198 = vmatpush2.msra.mxu0 0.0
    %199 = vmatprep.subr.mxu0 0.0
    %200 = vmatpush2.msra.mxu0 0.0
    %201 = vmatprep.subr.mxu0 0.0
    %202 = vmatpush2.msra.mxu0 0.0
    %203 = vmatprep.subr.mxu0 0.0
    %204 = vmatpush2.msra.mxu0 0.0
    %205 = vmatprep.subr.mxu0 0.0
    %206 = vmatpush2.msra.mxu0 0.0
    %207 = vmatprep.mubr.f32.mxu0 0.0
    %208 = vmatmul.mubr.f32.gmra.mxu0 %v120
    %v209 = vpop.f32.mrf.mxu0
    %v210 = vadd.f32 %v116, %v209
    %v211 = vpop.f32.mrf.mxu0
    %212 = vmatprep.mubr.f32.mxu0 0.0
    %213 = vmatmul.mubr.f32.gmra.mxu0 %v123
    %v214 = vpop.f32.mrf.mxu0
    %v215 = vadd.f32 %v116, %v214
    %v216 = vpop.f32.mrf.mxu0
    %217 = vmatprep.mubr.f32.mxu0 0.0
    %218 = vmatmul.mubr.f32.gmra.mxu0 %v126
    %v219 = vpop.f32.mrf.mxu0
    %v220 = vadd.f32 %v116, %v219
    %v221 = vpop.f32.mrf.mxu0
    %222 = vmatprep.mubr.f32.mxu0 0.0
    %223 = vmatmul.mubr.f32.gmra.mxu0 %v129
    %v224 = vpop.f32.mrf.mxu0
    %v225 = vadd.f32 %v116, %v224
    %v226 = vpop.f32.mrf.mxu0
    %227 = vmatprep.mubr.f32.mxu0 0.0
    %228 = vmatmul.mubr.f32.gmra.mxu0 %v132
    %v229 = vpop.f32.mrf.mxu0
    %v230 = vadd.f32 %v116, %v229
    %v231 = vpop.f32.mrf.mxu0
    %232 = vmatprep.mubr.f32.mxu0 0.0
    %233 = vmatmul.mubr.f32.gmra.mxu0 %v135
    %v234 = vpop.f32.mrf.mxu0
    %v235 = vadd.f32 %v116, %v234
    %v236 = vpop.f32.mrf.mxu0
    %237 = vmatprep.mubr.f32.mxu0 0.0
    %238 = vmatmul.mubr.f32.gmra.mxu0 %v138
    %v239 = vpop.f32.mrf.mxu0
    %v240 = vadd.f32 %v116, %v239
    %v241 = vpop.f32.mrf.mxu0
    %242 = vmatprep.mubr.f32.mxu0 0.0
    %243 = vmatmul.mubr.f32.gmra.mxu0 %v141
    %v244 = vpop.f32.mrf.mxu0
    %v245 = vadd.f32 %v116, %v244
    %v246 = vpop.f32.mrf.mxu0
    %247 = vdwg.mxu0
    %vm248 = vcmask 261120
    %v250 = vsel %vm248, 0.0, 0
    %252 = vmatprep.subr.mxu0 0.0
    %253 = vmatpush1.msra.mxu0 0.0
    %254 = vmatprep.subr.mxu0 0.0
    %255 = vmatpush1.msra.mxu0 0.0
    %256 = vmatprep.subr.mxu0 0.0
    %257 = vmatpush1.msra.mxu0 0.0
    %258 = vmatprep.subr.mxu0 0.0
    %259 = vmatpush1.msra.mxu0 0.0
    %260 = vmatprep.subr.mxu0 0.0
    %261 = vmatpush1.msra.mxu0 0.0
    %262 = vmatprep.subr.mxu0 0.0
    %263 = vmatpush1.msra.mxu0 0.0
    %264 = vmatprep.subr.mxu0 0.0
    %265 = vmatpush1.msra.mxu0 0.0
    %266 = vmatprep.subr.mxu0 0.0
    %267 = vmatpush1.msra.mxu0 0.0
    %268 = vmatprep.subr.mxu0 0.0
    %269 = vmatpush1.msra.mxu0 0.0
    %270 = vmatprep.subr.mxu0 0.0
    %271 = vmatpush1.msra.mxu0 0.0
    %272 = vmatprep.subr.mxu0 0.0
    %273 = vmatpush1.msra.mxu0 0.0
    %274 = vmatprep.subr.mxu0 0.0
    %275 = vmatpush1.msra.mxu0 0.0
    %276 = vmatprep.subr.mxu0 0.0
    %277 = vmatpush1.msra.mxu0 %v97
    %278 = vmatprep.subr.mxu0 0.0
    %279 = vmatpush1.msra.mxu0 %v96
    %280 = vmatprep.subr.mxu0 0.0
    %281 = vmatpush1.msra.mxu0 %v95
    %282 = vmatprep.subr.mxu0 0.0
    %283 = vmatpush1.msra.mxu0 %v94
    %284 = vmatprep.subr.mxu0 0.0
    %285 = vmatpush2.msra.mxu0 0.0
    %286 = vmatprep.subr.mxu0 0.0
    %287 = vmatpush2.msra.mxu0 0.0
    %288 = vmatprep.subr.mxu0 0.0
    %289 = vmatpush2.msra.mxu0 0.0
    %290 = vmatprep.subr.mxu0 0.0
    %291 = vmatpush2.msra.mxu0 0.0
    %292 = vmatprep.subr.mxu0 0.0
    %293 = vmatpush2.msra.mxu0 0.0
    %294 = vmatprep.subr.mxu0 0.0
    %295 = vmatpush2.msra.mxu0 0.0
    %296 = vmatprep.subr.mxu0 0.0
    %297 = vmatpush2.msra.mxu0 0.0
    %298 = vmatprep.subr.mxu0 0.0
    %299 = vmatpush2.msra.mxu0 0.0
    %300 = vmatprep.subr.mxu0 0.0
    %301 = vmatpush2.msra.mxu0 0.0
    %302 = vmatprep.subr.mxu0 0.0
    %303 = vmatpush2.msra.mxu0 0.0
    %304 = vmatprep.subr.mxu0 0.0
    %305 = vmatpush2.msra.mxu0 0.0
    %306 = vmatprep.subr.mxu0 0.0
    %307 = vmatpush2.msra.mxu0 0.0
    %308 = vmatprep.subr.mxu0 0.0
    %309 = vmatpush2.msra.mxu0 0.0
    %310 = vmatprep.subr.mxu0 0.0
    %311 = vmatpush2.msra.mxu0 0.0
    %312 = vmatprep.subr.mxu0 0.0
    %313 = vmatpush2.msra.mxu0 0.0
    %314 = vmatprep.subr.mxu0 0.0
    %315 = vmatpush2.msra.mxu0 0.0
    %316 = vmatprep.mubr.f32.mxu0 0.0
    %317 = vmatmul.mubr.f32.gmra.mxu0 %v250
    %v318 = vpop.f32.mrf.mxu0
    %v319 = vadd.f32 0.0, %v318
    %v320 = vpop.f32.mrf.mxu0
    %321 = vdwg.mxu0
    %v322 = vadd.f32 %v210, %v319
    %v323 = vxor.u32 %v322, 2147483648
    %v324 = vmul.f32 %v323, 1.442695
    %v325 = vpow.pop %v324
    %v326 = vadd.f32 %v325, 1.0
    %v327 = vrcp.pop %v326
    %v328 = vmul.f32 1.0, %v327
    %v329 = vtanh.pop %v322
    %v330 = vmul.f32 %v328, 0.0
    %332 = vrot.lane.b32.xlu0 %v329, 64
    %v333 = vpop.permute.xlu0 %332
    %v335 = vmul.f32 %v328, %v333
    %337 = vrot.lane.b32.xlu0 %v335, 32
    %v338 = vpop.permute.xlu0 %337
    %v340 = vadd.f32 %v330, %v338
    %v341 = vtanh.pop %v340
    %343 = vrot.lane.b32.xlu0 %v341, 64
    %v344 = vpop.permute.xlu0 %343
    %v346 = vmul.f32 %v328, %v344
    %348 = vrot.lane.b32.xlu0 %v346, 32
    %v349 = vpop.permute.xlu0 %348
    %v350 = vsel %vm248, %v349, 0
    %352 = vmatprep.subr.mxu0 0.0
    %353 = vmatpush1.msra.mxu0 0.0
    %354 = vmatprep.subr.mxu0 0.0
    %355 = vmatpush1.msra.mxu0 0.0
    %356 = vmatprep.subr.mxu0 0.0
    %357 = vmatpush1.msra.mxu0 0.0
    %358 = vmatprep.subr.mxu0 0.0
    %359 = vmatpush1.msra.mxu0 0.0
    %360 = vmatprep.subr.mxu0 0.0
    %361 = vmatpush1.msra.mxu0 0.0
    %362 = vmatprep.subr.mxu0 0.0
    %363 = vmatpush1.msra.mxu0 0.0
    %364 = vmatprep.subr.mxu0 0.0
    %365 = vmatpush1.msra.mxu0 0.0
    %366 = vmatprep.subr.mxu0 0.0
    %367 = vmatpush1.msra.mxu0 0.0
    %368 = vmatprep.subr.mxu0 0.0
    %369 = vmatpush1.msra.mxu0 0.0
    %370 = vmatprep.subr.mxu0 0.0
    %371 = vmatpush1.msra.mxu0 0.0
    %372 = vmatprep.subr.mxu0 0.0
    %373 = vmatpush1.msra.mxu0 0.0
    %374 = vmatprep.subr.mxu0 0.0
    %375 = vmatpush1.msra.mxu0 0.0
    %376 = vmatprep.subr.mxu0 0.0
    %377 = vmatpush1.msra.mxu0 %v97
    %378 = vmatprep.subr.mxu0 0.0
    %379 = vmatpush1.msra.mxu0 %v96
    %380 = vmatprep.subr.mxu0 0.0
    %381 = vmatpush1.msra.mxu0 %v95
    %382 = vmatprep.subr.mxu0 0.0
    %383 = vmatpush1.msra.mxu0 %v94
    %384 = vmatprep.subr.mxu0 0.0
    %385 = vmatpush2.msra.mxu0 0.0
    %386 = vmatprep.subr.mxu0 0.0
    %387 = vmatpush2.msra.mxu0 0.0
    %388 = vmatprep.subr.mxu0 0.0
    %389 = vmatpush2.msra.mxu0 0.0
    %390 = vmatprep.subr.mxu0 0.0
    %391 = vmatpush2.msra.mxu0 0.0
    %392 = vmatprep.subr.mxu0 0.0
    %393 = vmatpush2.msra.mxu0 0.0
    %394 = vmatprep.subr.mxu0 0.0
    %395 = vmatpush2.msra.mxu0 0.0
    %396 = vmatprep.subr.mxu0 0.0
    %397 = vmatpush2.msra.mxu0 0.0
    %398 = vmatprep.subr.mxu0 0.0
    %399 = vmatpush2.msra.mxu0 0.0
    %400 = vmatprep.subr.mxu0 0.0
    %401 = vmatpush2.msra.mxu0 0.0
    %402 = vmatprep.subr.mxu0 0.0
    %403 = vmatpush2.msra.mxu0 0.0
    %404 = vmatprep.subr.mxu0 0.0
    %405 = vmatpush2.msra.mxu0 0.0
    %406 = vmatprep.subr.mxu0 0.0
    %407 = vmatpush2.msra.mxu0 0.0
    %408 = vmatprep.subr.mxu0 0.0
    %409 = vmatpush2.msra.mxu0 0.0
    %410 = vmatprep.subr.mxu0 0.0
    %411 = vmatpush2.msra.mxu0 0.0
    %412 = vmatprep.subr.mxu0 0.0
    %413 = vmatpush2.msra.mxu0 0.0
    %414 = vmatprep.subr.mxu0 0.0
    %415 = vmatpush2.msra.mxu0 0.0
    %416 = vmatprep.mubr.f32.mxu0 0.0
    %417 = vmatmul.mubr.f32.gmra.mxu0 %v350
    %v418 = vpop.f32.mrf.mxu0
    %v419 = vadd.f32 0.0, %v418
    %v420 = vpop.f32.mrf.mxu0
    %421 = vdwg.mxu0
    %v422 = vadd.f32 %v215, %v419
    %v423 = vxor.u32 %v422, 2147483648
    %v424 = vmul.f32 %v423, 1.442695
    %v425 = vpow.pop %v424
    %v426 = vadd.f32 %v425, 1.0
    %v427 = vrcp.pop %v426
    %v428 = vmul.f32 1.0, %v427
    %v429 = vtanh.pop %v422
    %v430 = vmul.f32 %v428, %v340
    %432 = vrot.lane.b32.xlu0 %v429, 64
    %v433 = vpop.permute.xlu0 %432
    %v435 = vmul.f32 %v428, %v433
    %437 = vrot.lane.b32.xlu0 %v435, 32
    %v438 = vpop.permute.xlu0 %437
    %v440 = vadd.f32 %v430, %v438
    %v441 = vtanh.pop %v440
    %443 = vrot.lane.b32.xlu0 %v441, 64
    %v444 = vpop.permute.xlu0 %443
    %v446 = vmul.f32 %v428, %v444
    %448 = vrot.lane.b32.xlu0 %v446, 32
    %v449 = vpop.permute.xlu0 %448
    %v450 = vsel %vm248, %v449, 0
    %452 = vmatprep.subr.mxu0 0.0
    %453 = vmatpush1.msra.mxu0 0.0
    %454 = vmatprep.subr.mxu0 0.0
    %455 = vmatpush1.msra.mxu0 0.0
    %456 = vmatprep.subr.mxu0 0.0
    %457 = vmatpush1.msra.mxu0 0.0
    %458 = vmatprep.subr.mxu0 0.0
    %459 = vmatpush1.msra.mxu0 0.0
    %460 = vmatprep.subr.mxu0 0.0
    %461 = vmatpush1.msra.mxu0 0.0
    %462 = vmatprep.subr.mxu0 0.0
    %463 = vmatpush1.msra.mxu0 0.0
    %464 = vmatprep.subr.mxu0 0.0
    %465 = vmatpush1.msra.mxu0 0.0
    %466 = vmatprep.subr.mxu0 0.0
    %467 = vmatpush1.msra.mxu0 0.0
    %468 = vmatprep.subr.mxu0 0.0
    %469 = vmatpush1.msra.mxu0 0.0
    %470 = vmatprep.subr.mxu0 0.0
    %471 = vmatpush1.msra.mxu0 0.0
    %472 = vmatprep.subr.mxu0 0.0
    %473 = vmatpush1.msra.mxu0 0.0
    %474 = vmatprep.subr.mxu0 0.0
    %475 = vmatpush1.msra.mxu0 0.0
    %476 = vmatprep.subr.mxu0 0.0
    %477 = vmatpush1.msra.mxu0 %v97
    %478 = vmatprep.subr.mxu0 0.0
    %479 = vmatpush1.msra.mxu0 %v96
    %480 = vmatprep.subr.mxu0 0.0
    %481 = vmatpush1.msra.mxu0 %v95
    %482 = vmatprep.subr.mxu0 0.0
    %483 = vmatpush1.msra.mxu0 %v94
    %484 = vmatprep.subr.mxu0 0.0
    %485 = vmatpush2.msra.mxu0 0.0
    %486 = vmatprep.subr.mxu0 0.0
    %487 = vmatpush2.msra.mxu0 0.0
    %488 = vmatprep.subr.mxu0 0.0
    %489 = vmatpush2.msra.mxu0 0.0
    %490 = vmatprep.subr.mxu0 0.0
    %491 = vmatpush2.msra.mxu0 0.0
    %492 = vmatprep.subr.mxu0 0.0
    %493 = vmatpush2.msra.mxu0 0.0
    %494 = vmatprep.subr.mxu0 0.0
    %495 = vmatpush2.msra.mxu0 0.0
    %496 = vmatprep.subr.mxu0 0.0
    %497 = vmatpush2.msra.mxu0 0.0
    %498 = vmatprep.subr.mxu0 0.0
    %499 = vmatpush2.msra.mxu0 0.0
    %500 = vmatprep.subr.mxu0 0.0
    %501 = vmatpush2.msra.mxu0 0.0
    %502 = vmatprep.subr.mxu0 0.0
    %503 = vmatpush2.msra.mxu0 0.0
    %504 = vmatprep.subr.mxu0 0.0
    %505 = vmatpush2.msra.mxu0 0.0
    %506 = vmatprep.subr.mxu0 0.0
    %507 = vmatpush2.msra.mxu0 0.0
    %508 = vmatprep.subr.mxu0 0.0
    %509 = vmatpush2.msra.mxu0 0.0
    %510 = vmatprep.subr.mxu0 0.0
    %511 = vmatpush2.msra.mxu0 0.0
    %512 = vmatprep.subr.mxu0 0.0
    %513 = vmatpush2.msra.mxu0 0.0
    %514 = vmatprep.subr.mxu0 0.0
    %515 = vmatpush2.msra.mxu0 0.0
    %516 = vmatprep.mubr.f32.mxu0 0.0
    %517 = vmatmul.mubr.f32.gmra.mxu0 %v450
    %v518 = vpop.f32.mrf.mxu0
    %v519 = vadd.f32 0.0, %v518
    %v520 = vpop.f32.mrf.mxu0
    %521 = vdwg.mxu0
    %v522 = vadd.f32 %v220, %v519
    %v523 = vxor.u32 %v522, 2147483648
    %v524 = vmul.f32 %v523, 1.442695
    %v525 = vpow.pop %v524
    %v526 = vadd.f32 %v525, 1.0
    %v527 = vrcp.pop %v526
    %v528 = vmul.f32 1.0, %v527
    %v529 = vtanh.pop %v522
    %v530 = vmul.f32 %v528, %v440
    %532 = vrot.lane.b32.xlu0 %v529, 64
    %v533 = vpop.permute.xlu0 %532
    %v535 = vmul.f32 %v528, %v533
    %537 = vrot.lane.b32.xlu0 %v535, 32
    %v538 = vpop.permute.xlu0 %537
    %v540 = vadd.f32 %v530, %v538
    %v541 = vtanh.pop %v540
    %543 = vrot.lane.b32.xlu0 %v541, 64
    %v544 = vpop.permute.xlu0 %543
    %v546 = vmul.f32 %v528, %v544
    %548 = vrot.lane.b32.xlu0 %v546, 32
    %v549 = vpop.permute.xlu0 %548
    %v550 = vsel %vm248, %v549, 0
    %552 = vmatprep.subr.mxu0 0.0
    %553 = vmatpush1.msra.mxu0 0.0
    %554 = vmatprep.subr.mxu0 0.0
    %555 = vmatpush1.msra.mxu0 0.0
    %556 = vmatprep.subr.mxu0 0.0
    %557 = vmatpush1.msra.mxu0 0.0
    %558 = vmatprep.subr.mxu0 0.0
    %559 = vmatpush1.msra.mxu0 0.0
    %560 = vmatprep.subr.mxu0 0.0
    %561 = vmatpush1.msra.mxu0 0.0
    %562 = vmatprep.subr.mxu0 0.0
    %563 = vmatpush1.msra.mxu0 0.0
    %564 = vmatprep.subr.mxu0 0.0
    %565 = vmatpush1.msra.mxu0 0.0
    %566 = vmatprep.subr.mxu0 0.0
    %567 = vmatpush1.msra.mxu0 0.0
    %568 = vmatprep.subr.mxu0 0.0
    %569 = vmatpush1.msra.mxu0 0.0
    %570 = vmatprep.subr.mxu0 0.0
    %571 = vmatpush1.msra.mxu0 0.0
    %572 = vmatprep.subr.mxu0 0.0
    %573 = vmatpush1.msra.mxu0 0.0
    %574 = vmatprep.subr.mxu0 0.0
    %575 = vmatpush1.msra.mxu0 0.0
    %576 = vmatprep.subr.mxu0 0.0
    %577 = vmatpush1.msra.mxu0 %v97
    %578 = vmatprep.subr.mxu0 0.0
    %579 = vmatpush1.msra.mxu0 %v96
    %580 = vmatprep.subr.mxu0 0.0
    %581 = vmatpush1.msra.mxu0 %v95
    %582 = vmatprep.subr.mxu0 0.0
    %583 = vmatpush1.msra.mxu0 %v94
    %584 = vmatprep.subr.mxu0 0.0
    %585 = vmatpush2.msra.mxu0 0.0
    %586 = vmatprep.subr.mxu0 0.0
    %587 = vmatpush2.msra.mxu0 0.0
    %588 = vmatprep.subr.mxu0 0.0
    %589 = vmatpush2.msra.mxu0 0.0
    %590 = vmatprep.subr.mxu0 0.0
    %591 = vmatpush2.msra.mxu0 0.0
    %592 = vmatprep.subr.mxu0 0.0
    %593 = vmatpush2.msra.mxu0 0.0
    %594 = vmatprep.subr.mxu0 0.0
    %595 = vmatpush2.msra.mxu0 0.0
    %596 = vmatprep.subr.mxu0 0.0
    %597 = vmatpush2.msra.mxu0 0.0
    %598 = vmatprep.subr.mxu0 0.0
    %599 = vmatpush2.msra.mxu0 0.0
    %600 = vmatprep.subr.mxu0 0.0
    %601 = vmatpush2.msra.mxu0 0.0
    %602 = vmatprep.subr.mxu0 0.0
    %603 = vmatpush2.msra.mxu0 0.0
    %604 = vmatprep.subr.mxu0 0.0
    %605 = vmatpush2.msra.mxu0 0.0
    %606 = vmatprep.subr.mxu0 0.0
    %607 = vmatpush2.msra.mxu0 0.0
    %608 = vmatprep.subr.mxu0 0.0
    %609 = vmatpush2.msra.mxu0 0.0
    %610 = vmatprep.subr.mxu0 0.0
    %611 = vmatpush2.msra.mxu0 0.0
    %612 = vmatprep.subr.mxu0 0.0
    %613 = vmatpush2.msra.mxu0 0.0
    %614 = vmatprep.subr.mxu0 0.0
    %615 = vmatpush2.msra.mxu0 0.0
    %616 = vmatprep.mubr.f32.mxu0 0.0
    %617 = vmatmul.mubr.f32.gmra.mxu0 %v550
    %v618 = vpop.f32.mrf.mxu0
    %v619 = vadd.f32 0.0, %v618
    %v620 = vpop.f32.mrf.mxu0
    %621 = vdwg.mxu0
    %v622 = vadd.f32 %v225, %v619
    %v623 = vxor.u32 %v622, 2147483648
    %v624 = vmul.f32 %v623, 1.442695
    %v625 = vpow.pop %v624
    %v626 = vadd.f32 %v625, 1.0
    %v627 = vrcp.pop %v626
    %v628 = vmul.f32 1.0, %v627
    %v629 = vtanh.pop %v622
    %v630 = vmul.f32 %v628, %v540
    %632 = vrot.lane.b32.xlu0 %v629, 64
    %v633 = vpop.permute.xlu0 %632
    %v635 = vmul.f32 %v628, %v633
    %637 = vrot.lane.b32.xlu0 %v635, 32
    %v638 = vpop.permute.xlu0 %637
    %v640 = vadd.f32 %v630, %v638
    %v641 = vtanh.pop %v640
    %643 = vrot.lane.b32.xlu0 %v641, 64
    %v644 = vpop.permute.xlu0 %643
    %v646 = vmul.f32 %v628, %v644
    %648 = vrot.lane.b32.xlu0 %v646, 32
    %v649 = vpop.permute.xlu0 %648
    %v650 = vsel %vm248, %v649, 0
    %652 = vmatprep.subr.mxu0 0.0
    %653 = vmatpush1.msra.mxu0 0.0
    %654 = vmatprep.subr.mxu0 0.0
    %655 = vmatpush1.msra.mxu0 0.0
    %656 = vmatprep.subr.mxu0 0.0
    %657 = vmatpush1.msra.mxu0 0.0
    %658 = vmatprep.subr.mxu0 0.0
    %659 = vmatpush1.msra.mxu0 0.0
    %660 = vmatprep.subr.mxu0 0.0
    %661 = vmatpush1.msra.mxu0 0.0
    %662 = vmatprep.subr.mxu0 0.0
    %663 = vmatpush1.msra.mxu0 0.0
    %664 = vmatprep.subr.mxu0 0.0
    %665 = vmatpush1.msra.mxu0 0.0
    %666 = vmatprep.subr.mxu0 0.0
    %667 = vmatpush1.msra.mxu0 0.0
    %668 = vmatprep.subr.mxu0 0.0
    %669 = vmatpush1.msra.mxu0 0.0
    %670 = vmatprep.subr.mxu0 0.0
    %671 = vmatpush1.msra.mxu0 0.0
    %672 = vmatprep.subr.mxu0 0.0
    %673 = vmatpush1.msra.mxu0 0.0
    %674 = vmatprep.subr.mxu0 0.0
    %675 = vmatpush1.msra.mxu0 0.0
    %676 = vmatprep.subr.mxu0 0.0
    %677 = vmatpush1.msra.mxu0 %v97
    %678 = vmatprep.subr.mxu0 0.0
    %679 = vmatpush1.msra.mxu0 %v96
    %680 = vmatprep.subr.mxu0 0.0
    %681 = vmatpush1.msra.mxu0 %v95
    %682 = vmatprep.subr.mxu0 0.0
    %683 = vmatpush1.msra.mxu0 %v94
    %684 = vmatprep.subr.mxu0 0.0
    %685 = vmatpush2.msra.mxu0 0.0
    %686 = vmatprep.subr.mxu0 0.0
    %687 = vmatpush2.msra.mxu0 0.0
    %688 = vmatprep.subr.mxu0 0.0
    %689 = vmatpush2.msra.mxu0 0.0
    %690 = vmatprep.subr.mxu0 0.0
    %691 = vmatpush2.msra.mxu0 0.0
    %692 = vmatprep.subr.mxu0 0.0
    %693 = vmatpush2.msra.mxu0 0.0
    %694 = vmatprep.subr.mxu0 0.0
    %695 = vmatpush2.msra.mxu0 0.0
    %696 = vmatprep.subr.mxu0 0.0
    %697 = vmatpush2.msra.mxu0 0.0
    %698 = vmatprep.subr.mxu0 0.0
    %699 = vmatpush2.msra.mxu0 0.0
    %700 = vmatprep.subr.mxu0 0.0
    %701 = vmatpush2.msra.mxu0 0.0
    %702 = vmatprep.subr.mxu0 0.0
    %703 = vmatpush2.msra.mxu0 0.0
    %704 = vmatprep.subr.mxu0 0.0
    %705 = vmatpush2.msra.mxu0 0.0
    %706 = vmatprep.subr.mxu0 0.0
    %707 = vmatpush2.msra.mxu0 0.0
    %708 = vmatprep.subr.mxu0 0.0
    %709 = vmatpush2.msra.mxu0 0.0
    %710 = vmatprep.subr.mxu0 0.0
    %711 = vmatpush2.msra.mxu0 0.0
    %712 = vmatprep.subr.mxu0 0.0
    %713 = vmatpush2.msra.mxu0 0.0
    %714 = vmatprep.subr.mxu0 0.0
    %715 = vmatpush2.msra.mxu0 0.0
    %716 = vmatprep.mubr.f32.mxu0 0.0
    %717 = vmatmul.mubr.f32.gmra.mxu0 %v650
    %v718 = vpop.f32.mrf.mxu0
    %v719 = vadd.f32 0.0, %v718
    %v720 = vpop.f32.mrf.mxu0
    %721 = vdwg.mxu0
    %v722 = vadd.f32 %v230, %v719
    %v723 = vxor.u32 %v722, 2147483648
    %v724 = vmul.f32 %v723, 1.442695
    %v725 = vpow.pop %v724
    %v726 = vadd.f32 %v725, 1.0
    %v727 = vrcp.pop %v726
    %v728 = vmul.f32 1.0, %v727
    %v729 = vtanh.pop %v722
    %v730 = vmul.f32 %v728, %v640
    %732 = vrot.lane.b32.xlu0 %v729, 64
    %v733 = vpop.permute.xlu0 %732
    %v735 = vmul.f32 %v728, %v733
    %737 = vrot.lane.b32.xlu0 %v735, 32
    %v738 = vpop.permute.xlu0 %737
    %v740 = vadd.f32 %v730, %v738
    %v741 = vtanh.pop %v740
    %743 = vrot.lane.b32.xlu0 %v741, 64
    %v744 = vpop.permute.xlu0 %743
    %v746 = vmul.f32 %v728, %v744
    %748 = vrot.lane.b32.xlu0 %v746, 32
    %v749 = vpop.permute.xlu0 %748
    %v750 = vsel %vm248, %v749, 0
    %752 = vmatprep.subr.mxu0 0.0
    %753 = vmatpush1.msra.mxu0 0.0
    %754 = vmatprep.subr.mxu0 0.0
    %755 = vmatpush1.msra.mxu0 0.0
    %756 = vmatprep.subr.mxu0 0.0
    %757 = vmatpush1.msra.mxu0 0.0
    %758 = vmatprep.subr.mxu0 0.0
    %759 = vmatpush1.msra.mxu0 0.0
    %760 = vmatprep.subr.mxu0 0.0
    %761 = vmatpush1.msra.mxu0 0.0
    %762 = vmatprep.subr.mxu0 0.0
    %763 = vmatpush1.msra.mxu0 0.0
    %764 = vmatprep.subr.mxu0 0.0
    %765 = vmatpush1.msra.mxu0 0.0
    %766 = vmatprep.subr.mxu0 0.0
    %767 = vmatpush1.msra.mxu0 0.0
    %768 = vmatprep.subr.mxu0 0.0
    %769 = vmatpush1.msra.mxu0 0.0
    %770 = vmatprep.subr.mxu0 0.0
    %771 = vmatpush1.msra.mxu0 0.0
    %772 = vmatprep.subr.mxu0 0.0
    %773 = vmatpush1.msra.mxu0 0.0
    %774 = vmatprep.subr.mxu0 0.0
    %775 = vmatpush1.msra.mxu0 0.0
    %776 = vmatprep.subr.mxu0 0.0
    %777 = vmatpush1.msra.mxu0 %v97
    %778 = vmatprep.subr.mxu0 0.0
    %779 = vmatpush1.msra.mxu0 %v96
    %780 = vmatprep.subr.mxu0 0.0
    %781 = vmatpush1.msra.mxu0 %v95
    %782 = vmatprep.subr.mxu0 0.0
    %783 = vmatpush1.msra.mxu0 %v94
    %784 = vmatprep.subr.mxu0 0.0
    %785 = vmatpush2.msra.mxu0 0.0
    %786 = vmatprep.subr.mxu0 0.0
    %787 = vmatpush2.msra.mxu0 0.0
    %788 = vmatprep.subr.mxu0 0.0
    %789 = vmatpush2.msra.mxu0 0.0
    %790 = vmatprep.subr.mxu0 0.0
    %791 = vmatpush2.msra.mxu0 0.0
    %792 = vmatprep.subr.mxu0 0.0
    %793 = vmatpush2.msra.mxu0 0.0
    %794 = vmatprep.subr.mxu0 0.0
    %795 = vmatpush2.msra.mxu0 0.0
    %796 = vmatprep.subr.mxu0 0.0
    %797 = vmatpush2.msra.mxu0 0.0
    %798 = vmatprep.subr.mxu0 0.0
    %799 = vmatpush2.msra.mxu0 0.0
    %800 = vmatprep.subr.mxu0 0.0
    %801 = vmatpush2.msra.mxu0 0.0
    %802 = vmatprep.subr.mxu0 0.0
    %803 = vmatpush2.msra.mxu0 0.0
    %804 = vmatprep.subr.mxu0 0.0
    %805 = vmatpush2.msra.mxu0 0.0
    %806 = vmatprep.subr.mxu0 0.0
    %807 = vmatpush2.msra.mxu0 0.0
    %808 = vmatprep.subr.mxu0 0.0
    %809 = vmatpush2.msra.mxu0 0.0
    %810 = vmatprep.subr.mxu0 0.0
    %811 = vmatpush2.msra.mxu0 0.0
    %812 = vmatprep.subr.mxu0 0.0
    %813 = vmatpush2.msra.mxu0 0.0
    %814 = vmatprep.subr.mxu0 0.0
    %815 = vmatpush2.msra.mxu0 0.0
    %816 = vmatprep.mubr.f32.mxu0 0.0
    %817 = vmatmul.mubr.f32.gmra.mxu0 %v750
    %v818 = vpop.f32.mrf.mxu0
    %v819 = vadd.f32 0.0, %v818
    %v820 = vpop.f32.mrf.mxu0
    %821 = vdwg.mxu0
    %v822 = vadd.f32 %v235, %v819
    %v823 = vxor.u32 %v822, 2147483648
    %v824 = vmul.f32 %v823, 1.442695
    %v825 = vpow.pop %v824
    %v826 = vadd.f32 %v825, 1.0
    %v827 = vrcp.pop %v826
    %v828 = vmul.f32 1.0, %v827
    %v829 = vtanh.pop %v822
    %v830 = vmul.f32 %v828, %v740
    %832 = vrot.lane.b32.xlu0 %v829, 64
    %v833 = vpop.permute.xlu0 %832
    %v835 = vmul.f32 %v828, %v833
    %837 = vrot.lane.b32.xlu0 %v835, 32
    %v838 = vpop.permute.xlu0 %837
    %v840 = vadd.f32 %v830, %v838
    %v841 = vtanh.pop %v840
    %843 = vrot.lane.b32.xlu0 %v841, 64
    %v844 = vpop.permute.xlu0 %843
    %v846 = vmul.f32 %v828, %v844
    %848 = vrot.lane.b32.xlu0 %v846, 32
    %v849 = vpop.permute.xlu0 %848
    %v850 = vsel %vm248, %v849, 0
    %852 = vmatprep.subr.mxu0 0.0
    %853 = vmatpush1.msra.mxu0 0.0
    %854 = vmatprep.subr.mxu0 0.0
    %855 = vmatpush1.msra.mxu0 0.0
    %856 = vmatprep.subr.mxu0 0.0
    %857 = vmatpush1.msra.mxu0 0.0
    %858 = vmatprep.subr.mxu0 0.0
    %859 = vmatpush1.msra.mxu0 0.0
    %860 = vmatprep.subr.mxu0 0.0
    %861 = vmatpush1.msra.mxu0 0.0
    %862 = vmatprep.subr.mxu0 0.0
    %863 = vmatpush1.msra.mxu0 0.0
    %864 = vmatprep.subr.mxu0 0.0
    %865 = vmatpush1.msra.mxu0 0.0
    %866 = vmatprep.subr.mxu0 0.0
    %867 = vmatpush1.msra.mxu0 0.0
    %868 = vmatprep.subr.mxu0 0.0
    %869 = vmatpush1.msra.mxu0 0.0
    %870 = vmatprep.subr.mxu0 0.0
    %871 = vmatpush1.msra.mxu0 0.0
    %872 = vmatprep.subr.mxu0 0.0
    %873 = vmatpush1.msra.mxu0 0.0
    %874 = vmatprep.subr.mxu0 0.0
    %875 = vmatpush1.msra.mxu0 0.0
    %876 = vmatprep.subr.mxu0 0.0
    %877 = vmatpush1.msra.mxu0 %v97
    %878 = vmatprep.subr.mxu0 0.0
    %879 = vmatpush1.msra.mxu0 %v96
    %880 = vmatprep.subr.mxu0 0.0
    %881 = vmatpush1.msra.mxu0 %v95
    %882 = vmatprep.subr.mxu0 0.0
    %883 = vmatpush1.msra.mxu0 %v94
    %884 = vmatprep.subr.mxu0 0.0
    %885 = vmatpush2.msra.mxu0 0.0
    %886 = vmatprep.subr.mxu0 0.0
    %887 = vmatpush2.msra.mxu0 0.0
    %888 = vmatprep.subr.mxu0 0.0
    %889 = vmatpush2.msra.mxu0 0.0
    %890 = vmatprep.subr.mxu0 0.0
    %891 = vmatpush2.msra.mxu0 0.0
    %892 = vmatprep.subr.mxu0 0.0
    %893 = vmatpush2.msra.mxu0 0.0
    %894 = vmatprep.subr.mxu0 0.0
    %895 = vmatpush2.msra.mxu0 0.0
    %896 = vmatprep.subr.mxu0 0.0
    %897 = vmatpush2.msra.mxu0 0.0
    %898 = vmatprep.subr.mxu0 0.0
    %899 = vmatpush2.msra.mxu0 0.0
    %900 = vmatprep.subr.mxu0 0.0
    %901 = vmatpush2.msra.mxu0 0.0
    %902 = vmatprep.subr.mxu0 0.0
    %903 = vmatpush2.msra.mxu0 0.0
    %904 = vmatprep.subr.mxu0 0.0
    %905 = vmatpush2.msra.mxu0 0.0
    %906 = vmatprep.subr.mxu0 0.0
    %907 = vmatpush2.msra.mxu0 0.0
    %908 = vmatprep.subr.mxu0 0.0
    %909 = vmatpush2.msra.mxu0 0.0
    %910 = vmatprep.subr.mxu0 0.0
    %911 = vmatpush2.msra.mxu0 0.0
    %912 = vmatprep.subr.mxu0 0.0
    %913 = vmatpush2.msra.mxu0 0.0
    %914 = vmatprep.subr.mxu0 0.0
    %915 = vmatpush2.msra.mxu0 0.0
    %916 = vmatprep.mubr.f32.mxu0 0.0
    %917 = vmatmul.mubr.f32.gmra.mxu0 %v850
    %v918 = vpop.f32.mrf.mxu0
    %v919 = vadd.f32 0.0, %v918
    %v920 = vpop.f32.mrf.mxu0
    %921 = vdwg.mxu0
    %v922 = vadd.f32 %v240, %v919
    %v923 = vxor.u32 %v922, 2147483648
    %v924 = vmul.f32 %v923, 1.442695
    %v925 = vpow.pop %v924
    %v926 = vadd.f32 %v925, 1.0
    %v927 = vrcp.pop %v926
    %v928 = vmul.f32 1.0, %v927
    %v929 = vtanh.pop %v922
    %v930 = vmul.f32 %v928, %v840
    %932 = vrot.lane.b32.xlu0 %v929, 64
    %v933 = vpop.permute.xlu0 %932
    %v935 = vmul.f32 %v928, %v933
    %937 = vrot.lane.b32.xlu0 %v935, 32
    %v938 = vpop.permute.xlu0 %937
    %v940 = vadd.f32 %v930, %v938
    %v941 = vtanh.pop %v940
    %943 = vrot.lane.b32.xlu0 %v941, 64
    %v944 = vpop.permute.xlu0 %943
    %v946 = vmul.f32 %v928, %v944
    %948 = vrot.lane.b32.xlu0 %v946, 32
    %v949 = vpop.permute.xlu0 %948
    %v950 = vsel %vm248, %v949, 0
    %952 = vmatprep.subr.mxu0 0.0
    %953 = vmatpush1.msra.mxu0 0.0
    %954 = vmatprep.subr.mxu0 0.0
    %955 = vmatpush1.msra.mxu0 0.0
    %956 = vmatprep.subr.mxu0 0.0
    %957 = vmatpush1.msra.mxu0 0.0
    %958 = vmatprep.subr.mxu0 0.0
    %959 = vmatpush1.msra.mxu0 0.0
    %960 = vmatprep.subr.mxu0 0.0
    %961 = vmatpush1.msra.mxu0 0.0
    %962 = vmatprep.subr.mxu0 0.0
    %963 = vmatpush1.msra.mxu0 0.0
    %964 = vmatprep.subr.mxu0 0.0
    %965 = vmatpush1.msra.mxu0 0.0
    %966 = vmatprep.subr.mxu0 0.0
    %967 = vmatpush1.msra.mxu0 0.0
    %968 = vmatprep.subr.mxu0 0.0
    %969 = vmatpush1.msra.mxu0 0.0
    %970 = vmatprep.subr.mxu0 0.0
    %971 = vmatpush1.msra.mxu0 0.0
    %972 = vmatprep.subr.mxu0 0.0
    %973 = vmatpush1.msra.mxu0 0.0
    %974 = vmatprep.subr.mxu0 0.0
    %975 = vmatpush1.msra.mxu0 0.0
    %976 = vmatprep.subr.mxu0 0.0
    %977 = vmatpush1.msra.mxu0 %v97
    %978 = vmatprep.subr.mxu0 0.0
    %979 = vmatpush1.msra.mxu0 %v96
    %980 = vmatprep.subr.mxu0 0.0
    %981 = vmatpush1.msra.mxu0 %v95
    %982 = vmatprep.subr.mxu0 0.0
    %983 = vmatpush1.msra.mxu0 %v94
    %984 = vmatprep.subr.mxu0 0.0
    %985 = vmatpush2.msra.mxu0 0.0
    %986 = vmatprep.subr.mxu0 0.0
    %987 = vmatpush2.msra.mxu0 0.0
    %988 = vmatprep.subr.mxu0 0.0
    %989 = vmatpush2.msra.mxu0 0.0
    %990 = vmatprep.subr.mxu0 0.0
    %991 = vmatpush2.msra.mxu0 0.0
    %992 = vmatprep.subr.mxu0 0.0
    %993 = vmatpush2.msra.mxu0 0.0
    %994 = vmatprep.subr.mxu0 0.0
    %995 = vmatpush2.msra.mxu0 0.0
    %996 = vmatprep.subr.mxu0 0.0
    %997 = vmatpush2.msra.mxu0 0.0
    %998 = vmatprep.subr.mxu0 0.0
    %999 = vmatpush2.msra.mxu0 0.0
    %1000 = vmatprep.subr.mxu0 0.0
    %1001 = vmatpush2.msra.mxu0 0.0
    %1002 = vmatprep.subr.mxu0 0.0
    %1003 = vmatpush2.msra.mxu0 0.0
    %1004 = vmatprep.subr.mxu0 0.0
    %1005 = vmatpush2.msra.mxu0 0.0
    %1006 = vmatprep.subr.mxu0 0.0
    %1007 = vmatpush2.msra.mxu0 0.0
    %1008 = vmatprep.subr.mxu0 0.0
    %1009 = vmatpush2.msra.mxu0 0.0
    %1010 = vmatprep.subr.mxu0 0.0
    %1011 = vmatpush2.msra.mxu0 0.0
    %1012 = vmatprep.subr.mxu0 0.0
    %1013 = vmatpush2.msra.mxu0 0.0
    %1014 = vmatprep.subr.mxu0 0.0
    %1015 = vmatpush2.msra.mxu0 0.0
    %1016 = vmatprep.mubr.f32.mxu0 0.0
    %1017 = vmatmul.mubr.f32.gmra.mxu0 %v950
    %v1018 = vpop.f32.mrf.mxu0
    %v1019 = vadd.f32 0.0, %v1018
    %v1020 = vpop.f32.mrf.mxu0
    %1021 = vdwg.mxu0
    %v1022 = vadd.f32 %v245, %v1019
    %v1023 = vxor.u32 %v1022, 2147483648
    %v1024 = vmul.f32 %v1023, 1.442695
    %v1025 = vpow.pop %v1024
    %v1026 = vadd.f32 %v1025, 1.0
    %v1027 = vrcp.pop %v1026
    %v1028 = vmul.f32 1.0, %v1027
    %v1029 = vtanh.pop %v1022
    %v1030 = vmul.f32 %v1028, %v940
    %1032 = vrot.lane.b32.xlu0 %v1029, 64
    %v1033 = vpop.permute.xlu0 %1032
    %v1035 = vmul.f32 %v1028, %v1033
    %1037 = vrot.lane.b32.xlu0 %v1035, 32
    %v1038 = vpop.permute.xlu0 %1037
    %v1040 = vadd.f32 %v1030, %v1038
    %v1041 = vtanh.pop %v1040
    %1043 = vrot.lane.b32.xlu0 %v1041, 64
    %v1044 = vpop.permute.xlu0 %1043
    %v1046 = vmul.f32 %v1028, %v1044
    %v1047 = vld [vmem:[#allocation5] sm:$0xff]
    %v1048 = vld [vmem:[#allocation5 + $0x8] sm:$0xff]
    %v1049 = vld [vmem:[#allocation5 + $0x10] sm:$0xff]
    %v1050 = vld [vmem:[#allocation5 + $0x18] sm:$0xff]
    %v1051 = vld [vmem:[%s5] sm:$0x1]
    %v1053 = vlaneseq
    %v1054 = vshrl.u32 %v1053, 7
    %v1055 = vsub.s32 0, %v1054
    %v1056 = vrot.slane %v1051, %v1055
    %1059 = vrot.lane.b32.xlu0 %v1046, 32
    %v1060 = vpop.permute.xlu0 %1059
    %v1061 = vsel %vm248, %v1060, 0
    %1063 = vmatprep.subr.mxu0 0.0
    %1064 = vmatpush1.msra.mxu0 0.0
    %1065 = vmatprep.subr.mxu0 0.0
    %1066 = vmatpush1.msra.mxu0 0.0
    %1067 = vmatprep.subr.mxu0 0.0
    %1068 = vmatpush1.msra.mxu0 0.0
    %1069 = vmatprep.subr.mxu0 0.0
    %1070 = vmatpush1.msra.mxu0 0.0
    %1071 = vmatprep.subr.mxu0 0.0
    %1072 = vmatpush1.msra.mxu0 0.0
    %1073 = vmatprep.subr.mxu0 0.0
    %1074 = vmatpush1.msra.mxu0 0.0
    %1075 = vmatprep.subr.mxu0 0.0
    %1076 = vmatpush1.msra.mxu0 0.0
    %1077 = vmatprep.subr.mxu0 0.0
    %1078 = vmatpush1.msra.mxu0 0.0
    %1079 = vmatprep.subr.mxu0 0.0
    %1080 = vmatpush1.msra.mxu0 0.0
    %1081 = vmatprep.subr.mxu0 0.0
    %1082 = vmatpush1.msra.mxu0 0.0
    %1083 = vmatprep.subr.mxu0 0.0
    %1084 = vmatpush1.msra.mxu0 0.0
    %1085 = vmatprep.subr.mxu0 0.0
    %1086 = vmatpush1.msra.mxu0 0.0
    %1087 = vmatprep.subr.mxu0 0.0
    %1088 = vmatpush1.msra.mxu0 %v1050
    %1089 = vmatprep.subr.mxu0 0.0
    %1090 = vmatpush1.msra.mxu0 %v1049
    %1091 = vmatprep.subr.mxu0 0.0
    %1092 = vmatpush1.msra.mxu0 %v1048
    %1093 = vmatprep.subr.mxu0 0.0
    %1094 = vmatpush1.msra.mxu0 %v1047
    %1095 = vmatprep.subr.mxu0 0.0
    %1096 = vmatpush2.msra.mxu0 0.0
    %1097 = vmatprep.subr.mxu0 0.0
    %1098 = vmatpush2.msra.mxu0 0.0
    %1099 = vmatprep.subr.mxu0 0.0
    %1100 = vmatpush2.msra.mxu0 0.0
    %1101 = vmatprep.subr.mxu0 0.0
    %1102 = vmatpush2.msra.mxu0 0.0
    %1103 = vmatprep.subr.mxu0 0.0
    %1104 = vmatpush2.msra.mxu0 0.0
    %1105 = vmatprep.subr.mxu0 0.0
    %1106 = vmatpush2.msra.mxu0 0.0
    %1107 = vmatprep.subr.mxu0 0.0
    %1108 = vmatpush2.msra.mxu0 0.0
    %1109 = vmatprep.subr.mxu0 0.0
    %1110 = vmatpush2.msra.mxu0 0.0
    %1111 = vmatprep.subr.mxu0 0.0
    %1112 = vmatpush2.msra.mxu0 0.0
    %1113 = vmatprep.subr.mxu0 0.0
    %1114 = vmatpush2.msra.mxu0 0.0
    %1115 = vmatprep.subr.mxu0 0.0
    %1116 = vmatpush2.msra.mxu0 0.0
    %1117 = vmatprep.subr.mxu0 0.0
    %1118 = vmatpush2.msra.mxu0 0.0
    %1119 = vmatprep.subr.mxu0 0.0
    %1120 = vmatpush2.msra.mxu0 0.0
    %1121 = vmatprep.subr.mxu0 0.0
    %1122 = vmatpush2.msra.mxu0 0.0
    %1123 = vmatprep.subr.mxu0 0.0
    %1124 = vmatpush2.msra.mxu0 0.0
    %1125 = vmatprep.subr.mxu0 0.0
    %1126 = vmatpush2.msra.mxu0 0.0
    %1127 = vmatprep.mubr.f32.mxu0 0.0
    %1128 = vmatmul.mubr.f32.gmra.mxu0 %v1061
    %v1129 = vpop.f32.mrf.mxu0
    %v1130 = vadd.f32 %v1056, %v1129
    %v1131 = vpop.f32.mrf.mxu0
    %1132 = vdwg.mxu0
    %v1133 = vxor.u32 %v1130, 2147483648
    %v1134 = vmul.f32 %v1133, 1.442695
    %v1135 = vpow.pop %v1134
    %v1136 = vadd.f32 %v1135, 1.0
    %v1137 = vrcp.pop %v1136
    %v1138 = vmul.f32 1.0, %v1137
    %1140 = vrot.lane.b32.xlu0 %v1138, 96
    %v1141 = vpop.permute.xlu0 %1140
    %v1143 = vmul.f32 %v1046, %v1141
    %v1144 = vld [vmem:[#allocation7] sm:$0xff]
    %v1145 = vld [vmem:[#allocation7 + $0x8] sm:$0xff]
    %v1146 = vld [vmem:[#allocation7 + $0x10] sm:$0xff]
    %v1147 = vld [vmem:[#allocation7 + $0x18] sm:$0xff]
    %v1148 = vld [vmem:[%s8] sm:$0x1]
    %v1150 = vlaneseq
    %v1151 = vshrl.u32 %v1150, 7
    %v1152 = vsub.s32 0, %v1151
    %v1153 = vrot.slane %v1148, %v1152
    %1156 = vrot.lane.b32.xlu0 %v1143, 32
    %v1157 = vpop.permute.xlu0 %1156
    %v1158 = vsel %vm248, %v1157, 0
    %1160 = vmatprep.subr.mxu0 0.0
    %1161 = vmatpush1.msra.mxu0 0.0
    %1162 = vmatprep.subr.mxu0 0.0
    %1163 = vmatpush1.msra.mxu0 0.0
    %1164 = vmatprep.subr.mxu0 0.0
    %1165 = vmatpush1.msra.mxu0 0.0
    %1166 = vmatprep.subr.mxu0 0.0
    %1167 = vmatpush1.msra.mxu0 0.0
    %1168 = vmatprep.subr.mxu0 0.0
    %1169 = vmatpush1.msra.mxu0 0.0
    %1170 = vmatprep.subr.mxu0 0.0
    %1171 = vmatpush1.msra.mxu0 0.0
    %1172 = vmatprep.subr.mxu0 0.0
    %1173 = vmatpush1.msra.mxu0 0.0
    %1174 = vmatprep.subr.mxu0 0.0
    %1175 = vmatpush1.msra.mxu0 0.0
    %1176 = vmatprep.subr.mxu0 0.0
    %1177 = vmatpush1.msra.mxu0 0.0
    %1178 = vmatprep.subr.mxu0 0.0
    %1179 = vmatpush1.msra.mxu0 0.0
    %1180 = vmatprep.subr.mxu0 0.0
    %1181 = vmatpush1.msra.mxu0 0.0
    %1182 = vmatprep.subr.mxu0 0.0
    %1183 = vmatpush1.msra.mxu0 0.0
    %1184 = vmatprep.subr.mxu0 0.0
    %1185 = vmatpush1.msra.mxu0 %v1147
    %1186 = vmatprep.subr.mxu0 0.0
    %1187 = vmatpush1.msra.mxu0 %v1146
    %1188 = vmatprep.subr.mxu0 0.0
    %1189 = vmatpush1.msra.mxu0 %v1145
    %1190 = vmatprep.subr.mxu0 0.0
    %1191 = vmatpush1.msra.mxu0 %v1144
    %1192 = vmatprep.subr.mxu0 0.0
    %1193 = vmatpush2.msra.mxu0 0.0
    %1194 = vmatprep.subr.mxu0 0.0
    %1195 = vmatpush2.msra.mxu0 0.0
    %1196 = vmatprep.subr.mxu0 0.0
    %1197 = vmatpush2.msra.mxu0 0.0
    %1198 = vmatprep.subr.mxu0 0.0
    %1199 = vmatpush2.msra.mxu0 0.0
    %1200 = vmatprep.subr.mxu0 0.0
    %1201 = vmatpush2.msra.mxu0 0.0
    %1202 = vmatprep.subr.mxu0 0.0
    %1203 = vmatpush2.msra.mxu0 0.0
    %1204 = vmatprep.subr.mxu0 0.0
    %1205 = vmatpush2.msra.mxu0 0.0
    %1206 = vmatprep.subr.mxu0 0.0
    %1207 = vmatpush2.msra.mxu0 0.0
    %1208 = vmatprep.subr.mxu0 0.0
    %1209 = vmatpush2.msra.mxu0 0.0
    %1210 = vmatprep.subr.mxu0 0.0
    %1211 = vmatpush2.msra.mxu0 0.0
    %1212 = vmatprep.subr.mxu0 0.0
    %1213 = vmatpush2.msra.mxu0 0.0
    %1214 = vmatprep.subr.mxu0 0.0
    %1215 = vmatpush2.msra.mxu0 0.0
    %1216 = vmatprep.subr.mxu0 0.0
    %1217 = vmatpush2.msra.mxu0 0.0
    %1218 = vmatprep.subr.mxu0 0.0
    %1219 = vmatpush2.msra.mxu0 0.0
    %1220 = vmatprep.subr.mxu0 0.0
    %1221 = vmatpush2.msra.mxu0 0.0
    %1222 = vmatprep.subr.mxu0 0.0
    %1223 = vmatpush2.msra.mxu0 0.0
    %1224 = vmatprep.mubr.f32.mxu0 0.0
    %1225 = vmatmul.mubr.f32.gmra.mxu0 %v1158
    %v1226 = vpop.f32.mrf.mxu0
    %v1227 = vadd.f32 %v1153, %v1226
    %v1228 = vpop.f32.mrf.mxu0
    %1229 = vdwg.mxu0
    %1230 = vmatprep.subr.mxu0 0.0
    %1231 = vmatpush1.msra.mxu0 0.0
    %1232 = vmatprep.subr.mxu0 0.0
    %1233 = vmatpush1.msra.mxu0 0.0
    %1234 = vmatprep.subr.mxu0 0.0
    %1235 = vmatpush1.msra.mxu0 0.0
    %1236 = vmatprep.subr.mxu0 0.0
    %1237 = vmatpush1.msra.mxu0 0.0
    %1238 = vmatprep.subr.mxu0 0.0
    %1239 = vmatpush1.msra.mxu0 0.0
    %1240 = vmatprep.subr.mxu0 0.0
    %1241 = vmatpush1.msra.mxu0 0.0
    %1242 = vmatprep.subr.mxu0 0.0
    %1243 = vmatpush1.msra.mxu0 0.0
    %1244 = vmatprep.subr.mxu0 0.0
    %1245 = vmatpush1.msra.mxu0 0.0
    %1246 = vmatprep.subr.mxu0 0.0
    %1247 = vmatpush1.msra.mxu0 0.0
    %1248 = vmatprep.subr.mxu0 0.0
    %1249 = vmatpush1.msra.mxu0 0.0
    %1250 = vmatprep.subr.mxu0 0.0
    %1251 = vmatpush1.msra.mxu0 0.0
    %1252 = vmatprep.subr.mxu0 0.0
    %1253 = vmatpush1.msra.mxu0 0.0
    %1254 = vmatprep.subr.mxu0 0.0
    %1255 = vmatpush1.msra.mxu0 %v101
    %1256 = vmatprep.subr.mxu0 0.0
    %1257 = vmatpush1.msra.mxu0 %v100
    %1258 = vmatprep.subr.mxu0 0.0
    %1259 = vmatpush1.msra.mxu0 %v99
    %1260 = vmatprep.subr.mxu0 0.0
    %1261 = vmatpush1.msra.mxu0 %v98
    %1262 = vmatprep.subr.mxu0 0.0
    %1263 = vmatpush2.msra.mxu0 0.0
    %1264 = vmatprep.subr.mxu0 0.0
    %1265 = vmatpush2.msra.mxu0 0.0
    %1266 = vmatprep.subr.mxu0 0.0
    %1267 = vmatpush2.msra.mxu0 0.0
    %1268 = vmatprep.subr.mxu0 0.0
    %1269 = vmatpush2.msra.mxu0 0.0
    %1270 = vmatprep.subr.mxu0 0.0
    %1271 = vmatpush2.msra.mxu0 0.0
    %1272 = vmatprep.subr.mxu0 0.0
    %1273 = vmatpush2.msra.mxu0 0.0
    %1274 = vmatprep.subr.mxu0 0.0
    %1275 = vmatpush2.msra.mxu0 0.0
    %1276 = vmatprep.subr.mxu0 0.0
    %1277 = vmatpush2.msra.mxu0 0.0
    %1278 = vmatprep.subr.mxu0 0.0
    %1279 = vmatpush2.msra.mxu0 0.0
    %1280 = vmatprep.subr.mxu0 0.0
    %1281 = vmatpush2.msra.mxu0 0.0
    %1282 = vmatprep.subr.mxu0 0.0
    %1283 = vmatpush2.msra.mxu0 0.0
    %1284 = vmatprep.subr.mxu0 0.0
    %1285 = vmatpush2.msra.mxu0 0.0
    %1286 = vmatprep.subr.mxu0 0.0
    %1287 = vmatpush2.msra.mxu0 0.0
    %1288 = vmatprep.subr.mxu0 0.0
    %1289 = vmatpush2.msra.mxu0 0.0
    %1290 = vmatprep.subr.mxu0 0.0
    %1291 = vmatpush2.msra.mxu0 0.0
    %1292 = vmatprep.subr.mxu0 0.0
    %1293 = vmatpush2.msra.mxu0 0.0
    %1294 = vmatprep.mubr.f32.mxu0 0.0
    %1295 = vmatmul.mubr.f32.gmra.mxu0 %v250
    %v1296 = vpop.f32.mrf.mxu0
    %v1297 = vadd.f32 0.0, %v1296
    %v1298 = vpop.f32.mrf.mxu0
    %1299 = vdwg.mxu0
    %v1300 = vadd.f32 %v1227, %v1297
    %v1301 = vxor.u32 %v1300, 2147483648
    %v1302 = vmul.f32 %v1301, 1.442695
    %v1303 = vpow.pop %v1302
    %v1304 = vadd.f32 %v1303, 1.0
    %v1305 = vrcp.pop %v1304
    %v1306 = vmul.f32 1.0, %v1305
    %v1307 = vtanh.pop %v1300
    %v1308 = vmul.f32 %v1306, 0.0
    %1310 = vrot.lane.b32.xlu0 %v1307, 64
    %v1311 = vpop.permute.xlu0 %1310
    %v1313 = vmul.f32 %v1306, %v1311
    %1315 = vrot.lane.b32.xlu0 %v1313, 32
    %v1316 = vpop.permute.xlu0 %1315
    %v1318 = vadd.f32 %v1308, %v1316
    %v1319 = vtanh.pop %v1318
    %1321 = vrot.lane.b32.xlu0 %v1319, 64
    %v1322 = vpop.permute.xlu0 %1321
    %v1324 = vmul.f32 %v1306, %v1322
    %1326 = vrot.lane.b32.xlu0 %v1324, 32
    %v1327 = vpop.permute.xlu0 %1326
    %v1328 = vsel %vm248, %v1327, 0
    %1330 = vmatprep.subr.mxu0 0.0
    %1331 = vmatpush1.msra.mxu0 0.0
    %1332 = vmatprep.subr.mxu0 0.0
    %1333 = vmatpush1.msra.mxu0 0.0
    %1334 = vmatprep.subr.mxu0 0.0
    %1335 = vmatpush1.msra.mxu0 0.0
    %1336 = vmatprep.subr.mxu0 0.0
    %1337 = vmatpush1.msra.mxu0 0.0
    %1338 = vmatprep.subr.mxu0 0.0
    %1339 = vmatpush1.msra.mxu0 0.0
    %1340 = vmatprep.subr.mxu0 0.0
    %1341 = vmatpush1.msra.mxu0 0.0
    %1342 = vmatprep.subr.mxu0 0.0
    %1343 = vmatpush1.msra.mxu0 0.0
    %1344 = vmatprep.subr.mxu0 0.0
    %1345 = vmatpush1.msra.mxu0 0.0
    %1346 = vmatprep.subr.mxu0 0.0
    %1347 = vmatpush1.msra.mxu0 0.0
    %1348 = vmatprep.subr.mxu0 0.0
    %1349 = vmatpush1.msra.mxu0 0.0
    %1350 = vmatprep.subr.mxu0 0.0
    %1351 = vmatpush1.msra.mxu0 0.0
    %1352 = vmatprep.subr.mxu0 0.0
    %1353 = vmatpush1.msra.mxu0 0.0
    %1354 = vmatprep.subr.mxu0 0.0
    %1355 = vmatpush1.msra.mxu0 %v101
    %1356 = vmatprep.subr.mxu0 0.0
    %1357 = vmatpush1.msra.mxu0 %v100
    %1358 = vmatprep.subr.mxu0 0.0
    %1359 = vmatpush1.msra.mxu0 %v99
    %1360 = vmatprep.subr.mxu0 0.0
    %1361 = vmatpush1.msra.mxu0 %v98
    %1362 = vmatprep.subr.mxu0 0.0
    %1363 = vmatpush2.msra.mxu0 0.0
    %1364 = vmatprep.subr.mxu0 0.0
    %1365 = vmatpush2.msra.mxu0 0.0
    %1366 = vmatprep.subr.mxu0 0.0
    %1367 = vmatpush2.msra.mxu0 0.0
    %1368 = vmatprep.subr.mxu0 0.0
    %1369 = vmatpush2.msra.mxu0 0.0
    %1370 = vmatprep.subr.mxu0 0.0
    %1371 = vmatpush2.msra.mxu0 0.0
    %1372 = vmatprep.subr.mxu0 0.0
    %1373 = vmatpush2.msra.mxu0 0.0
    %1374 = vmatprep.subr.mxu0 0.0
    %1375 = vmatpush2.msra.mxu0 0.0
    %1376 = vmatprep.subr.mxu0 0.0
    %1377 = vmatpush2.msra.mxu0 0.0
    %1378 = vmatprep.subr.mxu0 0.0
    %1379 = vmatpush2.msra.mxu0 0.0
    %1380 = vmatprep.subr.mxu0 0.0
    %1381 = vmatpush2.msra.mxu0 0.0
    %1382 = vmatprep.subr.mxu0 0.0
    %1383 = vmatpush2.msra.mxu0 0.0
    %1384 = vmatprep.subr.mxu0 0.0
    %1385 = vmatpush2.msra.mxu0 0.0
    %1386 = vmatprep.subr.mxu0 0.0
    %1387 = vmatpush2.msra.mxu0 0.0
    %1388 = vmatprep.subr.mxu0 0.0
    %1389 = vmatpush2.msra.mxu0 0.0
    %1390 = vmatprep.subr.mxu0 0.0
    %1391 = vmatpush2.msra.mxu0 0.0
    %1392 = vmatprep.subr.mxu0 0.0
    %1393 = vmatpush2.msra.mxu0 0.0
    %1394 = vmatprep.mubr.f32.mxu0 0.0
    %1395 = vmatmul.mubr.f32.gmra.mxu0 %v1328
    %v1396 = vpop.f32.mrf.mxu0
    %v1397 = vadd.f32 0.0, %v1396
    %v1398 = vpop.f32.mrf.mxu0
    %1399 = vdwg.mxu0
    %v1400 = vadd.f32 %v1227, %v1397
    %v1401 = vxor.u32 %v1400, 2147483648
    %v1402 = vmul.f32 %v1401, 1.442695
    %v1403 = vpow.pop %v1402
    %v1404 = vadd.f32 %v1403, 1.0
    %v1405 = vrcp.pop %v1404
    %v1406 = vmul.f32 1.0, %v1405
    %v1407 = vtanh.pop %v1400
    %v1408 = vmul.f32 %v1406, %v1318
    %1410 = vrot.lane.b32.xlu0 %v1407, 64
    %v1411 = vpop.permute.xlu0 %1410
    %v1413 = vmul.f32 %v1406, %v1411
    %1415 = vrot.lane.b32.xlu0 %v1413, 32
    %v1416 = vpop.permute.xlu0 %1415
    %v1418 = vadd.f32 %v1408, %v1416
    %v1419 = vtanh.pop %v1418
    %1421 = vrot.lane.b32.xlu0 %v1419, 64
    %v1422 = vpop.permute.xlu0 %1421
    %v1424 = vmul.f32 %v1406, %v1422
    %1426 = vrot.lane.b32.xlu0 %v1424, 32
    %v1427 = vpop.permute.xlu0 %1426
    %v1428 = vsel %vm248, %v1427, 0
    %1430 = vmatprep.subr.mxu0 0.0
    %1431 = vmatpush1.msra.mxu0 0.0
    %1432 = vmatprep.subr.mxu0 0.0
    %1433 = vmatpush1.msra.mxu0 0.0
    %1434 = vmatprep.subr.mxu0 0.0
    %1435 = vmatpush1.msra.mxu0 0.0
    %1436 = vmatprep.subr.mxu0 0.0
    %1437 = vmatpush1.msra.mxu0 0.0
    %1438 = vmatprep.subr.mxu0 0.0
    %1439 = vmatpush1.msra.mxu0 0.0
    %1440 = vmatprep.subr.mxu0 0.0
    %1441 = vmatpush1.msra.mxu0 0.0
    %1442 = vmatprep.subr.mxu0 0.0
    %1443 = vmatpush1.msra.mxu0 0.0
    %1444 = vmatprep.subr.mxu0 0.0
    %1445 = vmatpush1.msra.mxu0 0.0
    %1446 = vmatprep.subr.mxu0 0.0
    %1447 = vmatpush1.msra.mxu0 0.0
    %1448 = vmatprep.subr.mxu0 0.0
    %1449 = vmatpush1.msra.mxu0 0.0
    %1450 = vmatprep.subr.mxu0 0.0
    %1451 = vmatpush1.msra.mxu0 0.0
    %1452 = vmatprep.subr.mxu0 0.0
    %1453 = vmatpush1.msra.mxu0 0.0
    %1454 = vmatprep.subr.mxu0 0.0
    %1455 = vmatpush1.msra.mxu0 %v101
    %1456 = vmatprep.subr.mxu0 0.0
    %1457 = vmatpush1.msra.mxu0 %v100
    %1458 = vmatprep.subr.mxu0 0.0
    %1459 = vmatpush1.msra.mxu0 %v99
    %1460 = vmatprep.subr.mxu0 0.0
    %1461 = vmatpush1.msra.mxu0 %v98
    %1462 = vmatprep.subr.mxu0 0.0
    %1463 = vmatpush2.msra.mxu0 0.0
    %1464 = vmatprep.subr.mxu0 0.0
    %1465 = vmatpush2.msra.mxu0 0.0
    %1466 = vmatprep.subr.mxu0 0.0
    %1467 = vmatpush2.msra.mxu0 0.0
    %1468 = vmatprep.subr.mxu0 0.0
    %1469 = vmatpush2.msra.mxu0 0.0
    %1470 = vmatprep.subr.mxu0 0.0
    %1471 = vmatpush2.msra.mxu0 0.0
    %1472 = vmatprep.subr.mxu0 0.0
    %1473 = vmatpush2.msra.mxu0 0.0
    %1474 = vmatprep.subr.mxu0 0.0
    %1475 = vmatpush2.msra.mxu0 0.0
    %1476 = vmatprep.subr.mxu0 0.0
    %1477 = vmatpush2.msra.mxu0 0.0
    %1478 = vmatprep.subr.mxu0 0.0
    %1479 = vmatpush2.msra.mxu0 0.0
    %1480 = vmatprep.subr.mxu0 0.0
    %1481 = vmatpush2.msra.mxu0 0.0
    %1482 = vmatprep.subr.mxu0 0.0
    %1483 = vmatpush2.msra.mxu0 0.0
    %1484 = vmatprep.subr.mxu0 0.0
    %1485 = vmatpush2.msra.mxu0 0.0
    %1486 = vmatprep.subr.mxu0 0.0
    %1487 = vmatpush2.msra.mxu0 0.0
    %1488 = vmatprep.subr.mxu0 0.0
    %1489 = vmatpush2.msra.mxu0 0.0
    %1490 = vmatprep.subr.mxu0 0.0
    %1491 = vmatpush2.msra.mxu0 0.0
    %1492 = vmatprep.subr.mxu0 0.0
    %1493 = vmatpush2.msra.mxu0 0.0
    %1494 = vmatprep.mubr.f32.mxu0 0.0
    %1495 = vmatmul.mubr.f32.gmra.mxu0 %v1428
    %v1496 = vpop.f32.mrf.mxu0
    %v1497 = vadd.f32 0.0, %v1496
    %v1498 = vpop.f32.mrf.mxu0
    %1499 = vdwg.mxu0
    %v1500 = vadd.f32 %v1227, %v1497
    %v1501 = vxor.u32 %v1500, 2147483648
    %v1502 = vmul.f32 %v1501, 1.442695
    %v1503 = vpow.pop %v1502
    %v1504 = vadd.f32 %v1503, 1.0
    %v1505 = vrcp.pop %v1504
    %v1506 = vmul.f32 1.0, %v1505
    %v1507 = vtanh.pop %v1500
    %v1508 = vmul.f32 %v1506, %v1418
    %1510 = vrot.lane.b32.xlu0 %v1507, 64
    %v1511 = vpop.permute.xlu0 %1510
    %v1513 = vmul.f32 %v1506, %v1511
    %1515 = vrot.lane.b32.xlu0 %v1513, 32
    %v1516 = vpop.permute.xlu0 %1515
    %v1518 = vadd.f32 %v1508, %v1516
    %v1519 = vtanh.pop %v1518
    %1521 = vrot.lane.b32.xlu0 %v1519, 64
    %v1522 = vpop.permute.xlu0 %1521
    %v1524 = vmul.f32 %v1506, %v1522
    %1526 = vrot.lane.b32.xlu0 %v1524, 32
    %v1527 = vpop.permute.xlu0 %1526
    %v1528 = vsel %vm248, %v1527, 0
    %1530 = vmatprep.subr.mxu0 0.0
    %1531 = vmatpush1.msra.mxu0 0.0
    %1532 = vmatprep.subr.mxu0 0.0
    %1533 = vmatpush1.msra.mxu0 0.0
    %1534 = vmatprep.subr.mxu0 0.0
    %1535 = vmatpush1.msra.mxu0 0.0
    %1536 = vmatprep.subr.mxu0 0.0
    %1537 = vmatpush1.msra.mxu0 0.0
    %1538 = vmatprep.subr.mxu0 0.0
    %1539 = vmatpush1.msra.mxu0 0.0
    %1540 = vmatprep.subr.mxu0 0.0
    %1541 = vmatpush1.msra.mxu0 0.0
    %1542 = vmatprep.subr.mxu0 0.0
    %1543 = vmatpush1.msra.mxu0 0.0
    %1544 = vmatprep.subr.mxu0 0.0
    %1545 = vmatpush1.msra.mxu0 0.0
    %1546 = vmatprep.subr.mxu0 0.0
    %1547 = vmatpush1.msra.mxu0 0.0
    %1548 = vmatprep.subr.mxu0 0.0
    %1549 = vmatpush1.msra.mxu0 0.0
    %1550 = vmatprep.subr.mxu0 0.0
    %1551 = vmatpush1.msra.mxu0 0.0
    %1552 = vmatprep.subr.mxu0 0.0
    %1553 = vmatpush1.msra.mxu0 0.0
    %1554 = vmatprep.subr.mxu0 0.0
    %1555 = vmatpush1.msra.mxu0 %v101
    %1556 = vmatprep.subr.mxu0 0.0
    %1557 = vmatpush1.msra.mxu0 %v100
    %1558 = vmatprep.subr.mxu0 0.0
    %1559 = vmatpush1.msra.mxu0 %v99
    %1560 = vmatprep.subr.mxu0 0.0
    %1561 = vmatpush1.msra.mxu0 %v98
    %1562 = vmatprep.subr.mxu0 0.0
    %1563 = vmatpush2.msra.mxu0 0.0
    %1564 = vmatprep.subr.mxu0 0.0
    %1565 = vmatpush2.msra.mxu0 0.0
    %1566 = vmatprep.subr.mxu0 0.0
    %1567 = vmatpush2.msra.mxu0 0.0
    %1568 = vmatprep.subr.mxu0 0.0
    %1569 = vmatpush2.msra.mxu0 0.0
    %1570 = vmatprep.subr.mxu0 0.0
    %1571 = vmatpush2.msra.mxu0 0.0
    %1572 = vmatprep.subr.mxu0 0.0
    %1573 = vmatpush2.msra.mxu0 0.0
    %1574 = vmatprep.subr.mxu0 0.0
    %1575 = vmatpush2.msra.mxu0 0.0
    %1576 = vmatprep.subr.mxu0 0.0
    %1577 = vmatpush2.msra.mxu0 0.0
    %1578 = vmatprep.subr.mxu0 0.0
    %1579 = vmatpush2.msra.mxu0 0.0
    %1580 = vmatprep.subr.mxu0 0.0
    %1581 = vmatpush2.msra.mxu0 0.0
    %1582 = vmatprep.subr.mxu0 0.0
    %1583 = vmatpush2.msra.mxu0 0.0
    %1584 = vmatprep.subr.mxu0 0.0
    %1585 = vmatpush2.msra.mxu0 0.0
    %1586 = vmatprep.subr.mxu0 0.0
    %1587 = vmatpush2.msra.mxu0 0.0
    %1588 = vmatprep.subr.mxu0 0.0
    %1589 = vmatpush2.msra.mxu0 0.0
    %1590 = vmatprep.subr.mxu0 0.0
    %1591 = vmatpush2.msra.mxu0 0.0
    %1592 = vmatprep.subr.mxu0 0.0
    %1593 = vmatpush2.msra.mxu0 0.0
    %1594 = vmatprep.mubr.f32.mxu0 0.0
    %1595 = vmatmul.mubr.f32.gmra.mxu0 %v1528
    %v1596 = vpop.f32.mrf.mxu0
    %v1597 = vadd.f32 0.0, %v1596
    %v1598 = vpop.f32.mrf.mxu0
    %1599 = vdwg.mxu0
    %v1600 = vadd.f32 %v1227, %v1597
    %v1601 = vxor.u32 %v1600, 2147483648
    %v1602 = vmul.f32 %v1601, 1.442695
    %v1603 = vpow.pop %v1602
    %v1604 = vadd.f32 %v1603, 1.0
    %v1605 = vrcp.pop %v1604
    %v1606 = vmul.f32 1.0, %v1605
    %v1607 = vtanh.pop %v1600
    %v1608 = vmul.f32 %v1606, %v1518
    %1610 = vrot.lane.b32.xlu0 %v1607, 64
    %v1611 = vpop.permute.xlu0 %1610
    %v1613 = vmul.f32 %v1606, %v1611
    %1615 = vrot.lane.b32.xlu0 %v1613, 32
    %v1616 = vpop.permute.xlu0 %1615
    %v1618 = vadd.f32 %v1608, %v1616
    %v1619 = vtanh.pop %v1618
    %1621 = vrot.lane.b32.xlu0 %v1619, 64
    %v1622 = vpop.permute.xlu0 %1621
    %v1624 = vmul.f32 %v1606, %v1622
    %1626 = vrot.lane.b32.xlu0 %v1624, 32
    %v1627 = vpop.permute.xlu0 %1626
    %v1628 = vsel %vm248, %v1627, 0
    %1630 = vmatprep.subr.mxu0 0.0
    %1631 = vmatpush1.msra.mxu0 0.0
    %1632 = vmatprep.subr.mxu0 0.0
    %1633 = vmatpush1.msra.mxu0 0.0
    %1634 = vmatprep.subr.mxu0 0.0
    %1635 = vmatpush1.msra.mxu0 0.0
    %1636 = vmatprep.subr.mxu0 0.0
    %1637 = vmatpush1.msra.mxu0 0.0
    %1638 = vmatprep.subr.mxu0 0.0
    %1639 = vmatpush1.msra.mxu0 0.0
    %1640 = vmatprep.subr.mxu0 0.0
    %1641 = vmatpush1.msra.mxu0 0.0
    %1642 = vmatprep.subr.mxu0 0.0
    %1643 = vmatpush1.msra.mxu0 0.0
    %1644 = vmatprep.subr.mxu0 0.0
    %1645 = vmatpush1.msra.mxu0 0.0
    %1646 = vmatprep.subr.mxu0 0.0
    %1647 = vmatpush1.msra.mxu0 0.0
    %1648 = vmatprep.subr.mxu0 0.0
    %1649 = vmatpush1.msra.mxu0 0.0
    %1650 = vmatprep.subr.mxu0 0.0
    %1651 = vmatpush1.msra.mxu0 0.0
    %1652 = vmatprep.subr.mxu0 0.0
    %1653 = vmatpush1.msra.mxu0 0.0
    %1654 = vmatprep.subr.mxu0 0.0
    %1655 = vmatpush1.msra.mxu0 %v101
    %1656 = vmatprep.subr.mxu0 0.0
    %1657 = vmatpush1.msra.mxu0 %v100
    %1658 = vmatprep.subr.mxu0 0.0
    %1659 = vmatpush1.msra.mxu0 %v99
    %1660 = vmatprep.subr.mxu0 0.0
    %1661 = vmatpush1.msra.mxu0 %v98
    %1662 = vmatprep.subr.mxu0 0.0
    %1663 = vmatpush2.msra.mxu0 0.0
    %1664 = vmatprep.subr.mxu0 0.0
    %1665 = vmatpush2.msra.mxu0 0.0
    %1666 = vmatprep.subr.mxu0 0.0
    %1667 = vmatpush2.msra.mxu0 0.0
    %1668 = vmatprep.subr.mxu0 0.0
    %1669 = vmatpush2.msra.mxu0 0.0
    %1670 = vmatprep.subr.mxu0 0.0
    %1671 = vmatpush2.msra.mxu0 0.0
    %1672 = vmatprep.subr.mxu0 0.0
    %1673 = vmatpush2.msra.mxu0 0.0
    %1674 = vmatprep.subr.mxu0 0.0
    %1675 = vmatpush2.msra.mxu0 0.0
    %1676 = vmatprep.subr.mxu0 0.0
    %1677 = vmatpush2.msra.mxu0 0.0
    %1678 = vmatprep.subr.mxu0 0.0
    %1679 = vmatpush2.msra.mxu0 0.0
    %1680 = vmatprep.subr.mxu0 0.0
    %1681 = vmatpush2.msra.mxu0 0.0
    %1682 = vmatprep.subr.mxu0 0.0
    %1683 = vmatpush2.msra.mxu0 0.0
    %1684 = vmatprep.subr.mxu0 0.0
    %1685 = vmatpush2.msra.mxu0 0.0
    %1686 = vmatprep.subr.mxu0 0.0
    %1687 = vmatpush2.msra.mxu0 0.0
    %1688 = vmatprep.subr.mxu0 0.0
    %1689 = vmatpush2.msra.mxu0 0.0
    %1690 = vmatprep.subr.mxu0 0.0
    %1691 = vmatpush2.msra.mxu0 0.0
    %1692 = vmatprep.subr.mxu0 0.0
    %1693 = vmatpush2.msra.mxu0 0.0
    %1694 = vmatprep.mubr.f32.mxu0 0.0
    %1695 = vmatmul.mubr.f32.gmra.mxu0 %v1628
    %v1696 = vpop.f32.mrf.mxu0
    %v1697 = vadd.f32 0.0, %v1696
    %v1698 = vpop.f32.mrf.mxu0
    %1699 = vdwg.mxu0
    %v1700 = vadd.f32 %v1227, %v1697
    %v1701 = vxor.u32 %v1700, 2147483648
    %v1702 = vmul.f32 %v1701, 1.442695
    %v1703 = vpow.pop %v1702
    %v1704 = vadd.f32 %v1703, 1.0
    %v1705 = vrcp.pop %v1704
    %v1706 = vmul.f32 1.0, %v1705
    %v1707 = vtanh.pop %v1700
    %v1708 = vmul.f32 %v1706, %v1618
    %1710 = vrot.lane.b32.xlu0 %v1707, 64
    %v1711 = vpop.permute.xlu0 %1710
    %v1713 = vmul.f32 %v1706, %v1711
    %1715 = vrot.lane.b32.xlu0 %v1713, 32
    %v1716 = vpop.permute.xlu0 %1715
    %v1718 = vadd.f32 %v1708, %v1716
    %v1719 = vtanh.pop %v1718
    %1721 = vrot.lane.b32.xlu0 %v1719, 64
    %v1722 = vpop.permute.xlu0 %1721
    %v1724 = vmul.f32 %v1706, %v1722
    %1726 = vrot.lane.b32.xlu0 %v1724, 32
    %v1727 = vpop.permute.xlu0 %1726
    %v1728 = vsel %vm248, %v1727, 0
    %1730 = vmatprep.subr.mxu0 0.0
    %1731 = vmatpush1.msra.mxu0 0.0
    %1732 = vmatprep.subr.mxu0 0.0
    %1733 = vmatpush1.msra.mxu0 0.0
    %1734 = vmatprep.subr.mxu0 0.0
    %1735 = vmatpush1.msra.mxu0 0.0
    %1736 = vmatprep.subr.mxu0 0.0
    %1737 = vmatpush1.msra.mxu0 0.0
    %1738 = vmatprep.subr.mxu0 0.0
    %1739 = vmatpush1.msra.mxu0 0.0
    %1740 = vmatprep.subr.mxu0 0.0
    %1741 = vmatpush1.msra.mxu0 0.0
    %1742 = vmatprep.subr.mxu0 0.0
    %1743 = vmatpush1.msra.mxu0 0.0
    %1744 = vmatprep.subr.mxu0 0.0
    %1745 = vmatpush1.msra.mxu0 0.0
    %1746 = vmatprep.subr.mxu0 0.0
    %1747 = vmatpush1.msra.mxu0 0.0
    %1748 = vmatprep.subr.mxu0 0.0
    %1749 = vmatpush1.msra.mxu0 0.0
    %1750 = vmatprep.subr.mxu0 0.0
    %1751 = vmatpush1.msra.mxu0 0.0
    %1752 = vmatprep.subr.mxu0 0.0
    %1753 = vmatpush1.msra.mxu0 0.0
    %1754 = vmatprep.subr.mxu0 0.0
    %1755 = vmatpush1.msra.mxu0 %v101
    %1756 = vmatprep.subr.mxu0 0.0
    %1757 = vmatpush1.msra.mxu0 %v100
    %1758 = vmatprep.subr.mxu0 0.0
    %1759 = vmatpush1.msra.mxu0 %v99
    %1760 = vmatprep.subr.mxu0 0.0
    %1761 = vmatpush1.msra.mxu0 %v98
    %1762 = vmatprep.subr.mxu0 0.0
    %1763 = vmatpush2.msra.mxu0 0.0
    %1764 = vmatprep.subr.mxu0 0.0
    %1765 = vmatpush2.msra.mxu0 0.0
    %1766 = vmatprep.subr.mxu0 0.0
    %1767 = vmatpush2.msra.mxu0 0.0
    %1768 = vmatprep.subr.mxu0 0.0
    %1769 = vmatpush2.msra.mxu0 0.0
    %1770 = vmatprep.subr.mxu0 0.0
    %1771 = vmatpush2.msra.mxu0 0.0
    %1772 = vmatprep.subr.mxu0 0.0
    %1773 = vmatpush2.msra.mxu0 0.0
    %1774 = vmatprep.subr.mxu0 0.0
    %1775 = vmatpush2.msra.mxu0 0.0
    %1776 = vmatprep.subr.mxu0 0.0
    %1777 = vmatpush2.msra.mxu0 0.0
    %1778 = vmatprep.subr.mxu0 0.0
    %1779 = vmatpush2.msra.mxu0 0.0
    %1780 = vmatprep.subr.mxu0 0.0
    %1781 = vmatpush2.msra.mxu0 0.0
    %1782 = vmatprep.subr.mxu0 0.0
    %1783 = vmatpush2.msra.mxu0 0.0
    %1784 = vmatprep.subr.mxu0 0.0
    %1785 = vmatpush2.msra.mxu0 0.0
    %1786 = vmatprep.subr.mxu0 0.0
    %1787 = vmatpush2.msra.mxu0 0.0
    %1788 = vmatprep.subr.mxu0 0.0
    %1789 = vmatpush2.msra.mxu0 0.0
    %1790 = vmatprep.subr.mxu0 0.0
    %1791 = vmatpush2.msra.mxu0 0.0
    %1792 = vmatprep.subr.mxu0 0.0
    %1793 = vmatpush2.msra.mxu0 0.0
    %1794 = vmatprep.mubr.f32.mxu0 0.0
    %1795 = vmatmul.mubr.f32.gmra.mxu0 %v1728
    %v1796 = vpop.f32.mrf.mxu0
    %v1797 = vadd.f32 0.0, %v1796
    %v1798 = vpop.f32.mrf.mxu0
    %1799 = vdwg.mxu0
    %v1800 = vadd.f32 %v1227, %v1797
    %v1801 = vxor.u32 %v1800, 2147483648
    %v1802 = vmul.f32 %v1801, 1.442695
    %v1803 = vpow.pop %v1802
    %v1804 = vadd.f32 %v1803, 1.0
    %v1805 = vrcp.pop %v1804
    %v1806 = vmul.f32 1.0, %v1805
    %v1807 = vtanh.pop %v1800
    %v1808 = vmul.f32 %v1806, %v1718
    %1810 = vrot.lane.b32.xlu0 %v1807, 64
    %v1811 = vpop.permute.xlu0 %1810
    %v1813 = vmul.f32 %v1806, %v1811
    %1815 = vrot.lane.b32.xlu0 %v1813, 32
    %v1816 = vpop.permute.xlu0 %1815
    %v1818 = vadd.f32 %v1808, %v1816
    %v1819 = vtanh.pop %v1818
    %1821 = vrot.lane.b32.xlu0 %v1819, 64
    %v1822 = vpop.permute.xlu0 %1821
    %v1824 = vmul.f32 %v1806, %v1822
    %1826 = vrot.lane.b32.xlu0 %v1824, 32
    %v1827 = vpop.permute.xlu0 %1826
    %v1828 = vsel %vm248, %v1827, 0
    %1830 = vmatprep.subr.mxu0 0.0
    %1831 = vmatpush1.msra.mxu0 0.0
    %1832 = vmatprep.subr.mxu0 0.0
    %1833 = vmatpush1.msra.mxu0 0.0
    %1834 = vmatprep.subr.mxu0 0.0
    %1835 = vmatpush1.msra.mxu0 0.0
    %1836 = vmatprep.subr.mxu0 0.0
    %1837 = vmatpush1.msra.mxu0 0.0
    %1838 = vmatprep.subr.mxu0 0.0
    %1839 = vmatpush1.msra.mxu0 0.0
    %1840 = vmatprep.subr.mxu0 0.0
    %1841 = vmatpush1.msra.mxu0 0.0
    %1842 = vmatprep.subr.mxu0 0.0
    %1843 = vmatpush1.msra.mxu0 0.0
    %1844 = vmatprep.subr.mxu0 0.0
    %1845 = vmatpush1.msra.mxu0 0.0
    %1846 = vmatprep.subr.mxu0 0.0
    %1847 = vmatpush1.msra.mxu0 0.0
    %1848 = vmatprep.subr.mxu0 0.0
    %1849 = vmatpush1.msra.mxu0 0.0
    %1850 = vmatprep.subr.mxu0 0.0
    %1851 = vmatpush1.msra.mxu0 0.0
    %1852 = vmatprep.subr.mxu0 0.0
    %1853 = vmatpush1.msra.mxu0 0.0
    %1854 = vmatprep.subr.mxu0 0.0
    %1855 = vmatpush1.msra.mxu0 %v101
    %1856 = vmatprep.subr.mxu0 0.0
    %1857 = vmatpush1.msra.mxu0 %v100
    %1858 = vmatprep.subr.mxu0 0.0
    %1859 = vmatpush1.msra.mxu0 %v99
    %1860 = vmatprep.subr.mxu0 0.0
    %1861 = vmatpush1.msra.mxu0 %v98
    %1862 = vmatprep.subr.mxu0 0.0
    %1863 = vmatpush2.msra.mxu0 0.0
    %1864 = vmatprep.subr.mxu0 0.0
    %1865 = vmatpush2.msra.mxu0 0.0
    %1866 = vmatprep.subr.mxu0 0.0
    %1867 = vmatpush2.msra.mxu0 0.0
    %1868 = vmatprep.subr.mxu0 0.0
    %1869 = vmatpush2.msra.mxu0 0.0
    %1870 = vmatprep.subr.mxu0 0.0
    %1871 = vmatpush2.msra.mxu0 0.0
    %1872 = vmatprep.subr.mxu0 0.0
    %1873 = vmatpush2.msra.mxu0 0.0
    %1874 = vmatprep.subr.mxu0 0.0
    %1875 = vmatpush2.msra.mxu0 0.0
    %1876 = vmatprep.subr.mxu0 0.0
    %1877 = vmatpush2.msra.mxu0 0.0
    %1878 = vmatprep.subr.mxu0 0.0
    %1879 = vmatpush2.msra.mxu0 0.0
    %1880 = vmatprep.subr.mxu0 0.0
    %1881 = vmatpush2.msra.mxu0 0.0
    %1882 = vmatprep.subr.mxu0 0.0
    %1883 = vmatpush2.msra.mxu0 0.0
    %1884 = vmatprep.subr.mxu0 0.0
    %1885 = vmatpush2.msra.mxu0 0.0
    %1886 = vmatprep.subr.mxu0 0.0
    %1887 = vmatpush2.msra.mxu0 0.0
    %1888 = vmatprep.subr.mxu0 0.0
    %1889 = vmatpush2.msra.mxu0 0.0
    %1890 = vmatprep.subr.mxu0 0.0
    %1891 = vmatpush2.msra.mxu0 0.0
    %1892 = vmatprep.subr.mxu0 0.0
    %1893 = vmatpush2.msra.mxu0 0.0
    %1894 = vmatprep.mubr.f32.mxu0 0.0
    %1895 = vmatmul.mubr.f32.gmra.mxu0 %v1828
    %v1896 = vpop.f32.mrf.mxu0
    %v1897 = vadd.f32 0.0, %v1896
    %v1898 = vpop.f32.mrf.mxu0
    %1899 = vdwg.mxu0
    %v1900 = vadd.f32 %v1227, %v1897
    %v1901 = vxor.u32 %v1900, 2147483648
    %v1902 = vmul.f32 %v1901, 1.442695
    %v1903 = vpow.pop %v1902
    %v1904 = vadd.f32 %v1903, 1.0
    %v1905 = vrcp.pop %v1904
    %v1906 = vmul.f32 1.0, %v1905
    %v1907 = vtanh.pop %v1900
    %v1908 = vmul.f32 %v1906, %v1818
    %1910 = vrot.lane.b32.xlu0 %v1907, 64
    %v1911 = vpop.permute.xlu0 %1910
    %v1913 = vmul.f32 %v1906, %v1911
    %1915 = vrot.lane.b32.xlu0 %v1913, 32
    %v1916 = vpop.permute.xlu0 %1915
    %v1918 = vadd.f32 %v1908, %v1916
    %v1919 = vtanh.pop %v1918
    %1921 = vrot.lane.b32.xlu0 %v1919, 64
    %v1922 = vpop.permute.xlu0 %1921
    %v1924 = vmul.f32 %v1906, %v1922
    %1926 = vrot.lane.b32.xlu0 %v1924, 32
    %v1927 = vpop.permute.xlu0 %1926
    %v1928 = vsel %vm248, %v1927, 0
    %1930 = vmatprep.subr.mxu0 0.0
    %1931 = vmatpush1.msra.mxu0 0.0
    %1932 = vmatprep.subr.mxu0 0.0
    %1933 = vmatpush1.msra.mxu0 0.0
    %1934 = vmatprep.subr.mxu0 0.0
    %1935 = vmatpush1.msra.mxu0 0.0
    %1936 = vmatprep.subr.mxu0 0.0
    %1937 = vmatpush1.msra.mxu0 0.0
    %1938 = vmatprep.subr.mxu0 0.0
    %1939 = vmatpush1.msra.mxu0 0.0
    %1940 = vmatprep.subr.mxu0 0.0
    %1941 = vmatpush1.msra.mxu0 0.0
    %1942 = vmatprep.subr.mxu0 0.0
    %1943 = vmatpush1.msra.mxu0 0.0
    %1944 = vmatprep.subr.mxu0 0.0
    %1945 = vmatpush1.msra.mxu0 0.0
    %1946 = vmatprep.subr.mxu0 0.0
    %1947 = vmatpush1.msra.mxu0 0.0
    %1948 = vmatprep.subr.mxu0 0.0
    %1949 = vmatpush1.msra.mxu0 0.0
    %1950 = vmatprep.subr.mxu0 0.0
    %1951 = vmatpush1.msra.mxu0 0.0
    %1952 = vmatprep.subr.mxu0 0.0
    %1953 = vmatpush1.msra.mxu0 0.0
    %1954 = vmatprep.subr.mxu0 0.0
    %1955 = vmatpush1.msra.mxu0 %v101
    %1956 = vmatprep.subr.mxu0 0.0
    %1957 = vmatpush1.msra.mxu0 %v100
    %1958 = vmatprep.subr.mxu0 0.0
    %1959 = vmatpush1.msra.mxu0 %v99
    %1960 = vmatprep.subr.mxu0 0.0
    %1961 = vmatpush1.msra.mxu0 %v98
    %1962 = vmatprep.subr.mxu0 0.0
    %1963 = vmatpush2.msra.mxu0 0.0
    %1964 = vmatprep.subr.mxu0 0.0
    %1965 = vmatpush2.msra.mxu0 0.0
    %1966 = vmatprep.subr.mxu0 0.0
    %1967 = vmatpush2.msra.mxu0 0.0
    %1968 = vmatprep.subr.mxu0 0.0
    %1969 = vmatpush2.msra.mxu0 0.0
    %1970 = vmatprep.subr.mxu0 0.0
    %1971 = vmatpush2.msra.mxu0 0.0
    %1972 = vmatprep.subr.mxu0 0.0
    %1973 = vmatpush2.msra.mxu0 0.0
    %1974 = vmatprep.subr.mxu0 0.0
    %1975 = vmatpush2.msra.mxu0 0.0
    %1976 = vmatprep.subr.mxu0 0.0
    %1977 = vmatpush2.msra.mxu0 0.0
    %1978 = vmatprep.subr.mxu0 0.0
    %1979 = vmatpush2.msra.mxu0 0.0
    %1980 = vmatprep.subr.mxu0 0.0
    %1981 = vmatpush2.msra.mxu0 0.0
    %1982 = vmatprep.subr.mxu0 0.0
    %1983 = vmatpush2.msra.mxu0 0.0
    %1984 = vmatprep.subr.mxu0 0.0
    %1985 = vmatpush2.msra.mxu0 0.0
    %1986 = vmatprep.subr.mxu0 0.0
    %1987 = vmatpush2.msra.mxu0 0.0
    %1988 = vmatprep.subr.mxu0 0.0
    %1989 = vmatpush2.msra.mxu0 0.0
    %1990 = vmatprep.subr.mxu0 0.0
    %1991 = vmatpush2.msra.mxu0 0.0
    %1992 = vmatprep.subr.mxu0 0.0
    %1993 = vmatpush2.msra.mxu0 0.0
    %1994 = vmatprep.mubr.f32.mxu0 0.0
    %1995 = vmatmul.mubr.f32.gmra.mxu0 %v1928
    %v1996 = vpop.f32.mrf.mxu0
    %v1997 = vadd.f32 0.0, %v1996
    %v1998 = vpop.f32.mrf.mxu0
    %1999 = vdwg.mxu0
    %v2000 = vadd.f32 %v1227, %v1997
    %v2001 = vxor.u32 %v2000, 2147483648
    %v2002 = vmul.f32 %v2001, 1.442695
    %v2003 = vpow.pop %v2002
    %v2004 = vadd.f32 %v2003, 1.0
    %v2005 = vrcp.pop %v2004
    %v2006 = vmul.f32 1.0, %v2005
    %v2007 = vtanh.pop %v2000
    %v2008 = vmul.f32 %v2006, %v1918
    %2010 = vrot.lane.b32.xlu0 %v2007, 64
    %v2011 = vpop.permute.xlu0 %2010
    %v2013 = vmul.f32 %v2006, %v2011
    %2015 = vrot.lane.b32.xlu0 %v2013, 32
    %v2016 = vpop.permute.xlu0 %2015
    %v2018 = vadd.f32 %v2008, %v2016
    %v2019 = vtanh.pop %v2018
    %2021 = vrot.lane.b32.xlu0 %v2019, 64
    %v2022 = vpop.permute.xlu0 %2021
    %v2024 = vmul.f32 %v2006, %v2022
    %v2025 = vld [vmem:[%s9] sm:$0xff]
    %v2026 = vld [vmem:[%s9 + $0x8] sm:$0xff]
    %v2027 = vld [vmem:[%s9 + $0x10] sm:$0xff]
    %v2028 = vld [vmem:[%s9 + $0x18] sm:$0xff]
    %v2029 = vld [vmem:[%s10] sm:$0x1]
    %v2031 = vlaneseq
    %v2032 = vshrl.u32 %v2031, 7
    %v2033 = vsub.s32 0, %v2032
    %v2034 = vrot.slane %v2029, %v2033
    %2037 = vrot.lane.b32.xlu0 %v2024, 32
    %v2038 = vpop.permute.xlu0 %2037
    %v2039 = vsel %vm248, %v2038, 0
    %2041 = vmatprep.subr.mxu0 0.0
    %2042 = vmatpush1.msra.mxu0 0.0
    %2043 = vmatprep.subr.mxu0 0.0
    %2044 = vmatpush1.msra.mxu0 0.0
    %2045 = vmatprep.subr.mxu0 0.0
    %2046 = vmatpush1.msra.mxu0 0.0
    %2047 = vmatprep.subr.mxu0 0.0
    %2048 = vmatpush1.msra.mxu0 0.0
    %2049 = vmatprep.subr.mxu0 0.0
    %2050 = vmatpush1.msra.mxu0 0.0
    %2051 = vmatprep.subr.mxu0 0.0
    %2052 = vmatpush1.msra.mxu0 0.0
    %2053 = vmatprep.subr.mxu0 0.0
    %2054 = vmatpush1.msra.mxu0 0.0
    %2055 = vmatprep.subr.mxu0 0.0
    %2056 = vmatpush1.msra.mxu0 0.0
    %2057 = vmatprep.subr.mxu0 0.0
    %2058 = vmatpush1.msra.mxu0 0.0
    %2059 = vmatprep.subr.mxu0 0.0
    %2060 = vmatpush1.msra.mxu0 0.0
    %2061 = vmatprep.subr.mxu0 0.0
    %2062 = vmatpush1.msra.mxu0 0.0
    %2063 = vmatprep.subr.mxu0 0.0
    %2064 = vmatpush1.msra.mxu0 0.0
    %2065 = vmatprep.subr.mxu0 0.0
    %2066 = vmatpush1.msra.mxu0 %v2028
    %2067 = vmatprep.subr.mxu0 0.0
    %2068 = vmatpush1.msra.mxu0 %v2027
    %2069 = vmatprep.subr.mxu0 0.0
    %2070 = vmatpush1.msra.mxu0 %v2026
    %2071 = vmatprep.subr.mxu0 0.0
    %2072 = vmatpush1.msra.mxu0 %v2025
    %2073 = vmatprep.subr.mxu0 0.0
    %2074 = vmatpush2.msra.mxu0 0.0
    %2075 = vmatprep.subr.mxu0 0.0
    %2076 = vmatpush2.msra.mxu0 0.0
    %2077 = vmatprep.subr.mxu0 0.0
    %2078 = vmatpush2.msra.mxu0 0.0
    %2079 = vmatprep.subr.mxu0 0.0
    %2080 = vmatpush2.msra.mxu0 0.0
    %2081 = vmatprep.subr.mxu0 0.0
    %2082 = vmatpush2.msra.mxu0 0.0
    %2083 = vmatprep.subr.mxu0 0.0
    %2084 = vmatpush2.msra.mxu0 0.0
    %2085 = vmatprep.subr.mxu0 0.0
    %2086 = vmatpush2.msra.mxu0 0.0
    %2087 = vmatprep.subr.mxu0 0.0
    %2088 = vmatpush2.msra.mxu0 0.0
    %2089 = vmatprep.subr.mxu0 0.0
    %2090 = vmatpush2.msra.mxu0 0.0
    %2091 = vmatprep.subr.mxu0 0.0
    %2092 = vmatpush2.msra.mxu0 0.0
    %2093 = vmatprep.subr.mxu0 0.0
    %2094 = vmatpush2.msra.mxu0 0.0
    %2095 = vmatprep.subr.mxu0 0.0
    %2096 = vmatpush2.msra.mxu0 0.0
    %2097 = vmatprep.subr.mxu0 0.0
    %2098 = vmatpush2.msra.mxu0 0.0
    %2099 = vmatprep.subr.mxu0 0.0
    %2100 = vmatpush2.msra.mxu0 0.0
    %2101 = vmatprep.subr.mxu0 0.0
    %2102 = vmatpush2.msra.mxu0 0.0
    %2103 = vmatprep.subr.mxu0 0.0
    %2104 = vmatpush2.msra.mxu0 0.0
    %2105 = vmatprep.mubr.f32.mxu0 0.0
    %2106 = vmatmul.mubr.f32.gmra.mxu0 %v1328
    %v2107 = vpop.f32.mrf.mxu0
    %v2108 = vadd.f32 %v2034, %v2107
    %v2109 = vpop.f32.mrf.mxu0
    %2110 = vmatprep.mubr.f32.mxu0 0.0
    %2111 = vmatmul.mubr.f32.gmra.mxu0 %v1428
    %v2112 = vpop.f32.mrf.mxu0
    %v2113 = vadd.f32 %v2034, %v2112
    %v2114 = vpop.f32.mrf.mxu0
    %2115 = vmatprep.mubr.f32.mxu0 0.0
    %2116 = vmatmul.mubr.f32.gmra.mxu0 %v1528
    %v2117 = vpop.f32.mrf.mxu0
    %v2118 = vadd.f32 %v2034, %v2117
    %v2119 = vpop.f32.mrf.mxu0
    %2120 = vmatprep.mubr.f32.mxu0 0.0
    %2121 = vmatmul.mubr.f32.gmra.mxu0 %v1628
    %v2122 = vpop.f32.mrf.mxu0
    %v2123 = vadd.f32 %v2034, %v2122
    %v2124 = vpop.f32.mrf.mxu0
    %2125 = vmatprep.mubr.f32.mxu0 0.0
    %2126 = vmatmul.mubr.f32.gmra.mxu0 %v1728
    %v2127 = vpop.f32.mrf.mxu0
    %v2128 = vadd.f32 %v2034, %v2127
    %v2129 = vpop.f32.mrf.mxu0
    %2130 = vmatprep.mubr.f32.mxu0 0.0
    %2131 = vmatmul.mubr.f32.gmra.mxu0 %v1828
    %v2132 = vpop.f32.mrf.mxu0
    %v2133 = vadd.f32 %v2034, %v2132
    %v2134 = vpop.f32.mrf.mxu0
    %2135 = vmatprep.mubr.f32.mxu0 0.0
    %2136 = vmatmul.mubr.f32.gmra.mxu0 %v1928
    %v2137 = vpop.f32.mrf.mxu0
    %v2138 = vadd.f32 %v2034, %v2137
    %v2139 = vpop.f32.mrf.mxu0
    %2140 = vmatprep.mubr.f32.mxu0 0.0
    %2141 = vmatmul.mubr.f32.gmra.mxu0 %v2039
    %v2142 = vpop.f32.mrf.mxu0
    %v2143 = vadd.f32 %v2034, %v2142
    %v2144 = vpop.f32.mrf.mxu0
    %2145 = vdwg.mxu0
    %2146 = vst.msk [vmem:[#allocation10] sm:$0xff] %vm118, %v2108
    %2147 = vst.msk [vmem:[#allocation10 + $0x8] sm:$0xff] %vm118, %v2113
    %2148 = vst.msk [vmem:[#allocation10 + $0x10] sm:$0xff] %vm118, %v2118
    %2149 = vst.msk [vmem:[#allocation10 + $0x18] sm:$0xff] %vm118, %v2123
    %2150 = vst.msk [vmem:[#allocation10 + $0x20] sm:$0xff] %vm118, %v2128
    %2151 = vst.msk [vmem:[#allocation10 + $0x28] sm:$0xff] %vm118, %v2133
    %2152 = vst.msk [vmem:[#allocation10 + $0x30] sm:$0xff] %vm118, %v2138
    %2153 = vst.msk [vmem:[#allocation10 + $0x38] sm:$0xff] %vm118, %v2143
    // Predicated region
    $region62: #{tpu_custom_call.1} parent=1 // pred_check
      _
    $region63: #{tpu_custom_call.1} parent=1 // pred_check_branch
      %2155 = sbr.rel (0) target = $region65
    $region64: #{tpu_custom_call.1} parent=1 // pred_region
      %s2157 = ssub.s32 1024, 1024
      %2158 = vsyncadd [#allocation4], %s2157
      %s2159 = sshll.u32 [#allocation10], 4
      %s2160 = int_to_ptr.vmem [resolvable:$true] %s2159
      %2165 = dma.vmem_to_hbm [thread:$0]  %s2160, 1024, %s11, [#allocation4], 128, 128, 8
    $region65: #{tpu_custom_call.1} parent=1 // pred_fallthru
      _
    // Predicated region
    $region66: #{tpu_custom_call.1} parent=1 // pred_check
      _
    $region67: #{tpu_custom_call.1} parent=1 // pred_check_branch
      %2167 = sbr.rel (0) target = $region69
    $region68: #{tpu_custom_call.1} parent=1 // pred_region
      %2168 = dma.done [#allocation4], 1024
    $region69: #{tpu_custom_call.1} parent=1 // pred_fallthru
      _
    %2169 = vsyncpa [#allocation3], 1
    %2170 = vsyncpa [#allocation6], 1
    %2171 = vsyncpa [#allocation9], 1
    %2172 = vsyncpa [#allocation4], 1

</llo_original>
